<compile_context>
chip_gen: v5e
topology: v5e:2x2
jax: 0.10.0
libtpu: 0.0.40
codegen_flags: <defaults>
</compile_context>

<pallas_src>
import functools

import jax
import jax.numpy as jnp
import numpy as np
from jax.experimental import pallas as pl
from jax.experimental.pallas import tpu as pltpu

C1 = 0.01 ** 2
C2 = 0.03 ** 2


def _ssim_kernel(x_ref, y_ref, o_ref, xp_ref, yp_ref, *, true_w):
    """One block of (B, H, WL) planes -> (B, H, WL) SSIM-loss planes.

    x_ref / y_ref : (B, H, WL) input planes (WL = lane-padded width).
    o_ref         : (B, H, WL) output planes.
    xp_ref/yp_ref : (B, H+2, WL) f32 scratch, *vertically* reflection-padded
                    planes (lane-dense, no horizontal padding).
    true_w        : original image width (<= WL); reflection happens at the
                    true image borders, padded lanes >= true_w are discarded
                    by the wrapper.
    """
    B, H, WL = o_ref.shape

    xv = x_ref[...].astype(jnp.float32)
    yv = y_ref[...].astype(jnp.float32)

    # ---- Vertically reflection-padded planes (lane-dense scratch). ----------
    # Rows 1..H = plane, row 0 = row 1, row H+1 = row H-2, written directly
    # from the input value (no scratch round-trip for the pad rows).
    xp_ref[:, 1:H + 1, :] = xv
    xp_ref[:, 0:1, :] = xv[:, 1:2, :]
    xp_ref[:, H + 1:H + 2, :] = xv[:, H - 2:H - 1, :]
    yp_ref[:, 1:H + 1, :] = yv
    yp_ref[:, 0:1, :] = yv[:, 1:2, :]
    yp_ref[:, H + 1:H + 2, :] = yv[:, H - 2:H - 1, :]

    # Read each padded plane exactly once; everything below is fused.
    xp = xp_ref[...]
    yp = yp_ref[...]

    def vsum(p):
        # Vertical 3-tap box sum over the padded rows: (B, H+2, WL) -> (B, H, WL)
        return p[:, 0:H, :] + p[:, 1:H + 1, :] + p[:, 2:H + 2, :]

    vx = vsum(xp)
    vy = vsum(yp)
    vxx = vsum(xp * xp)
    vyy = vsum(yp * yp)
    vxy = vsum(xp * yp)

    # Horizontal reflect 3-tap along lanes via XLU rolls + edge fix-up.
    lane = jax.lax.broadcasted_iota(jnp.int32, (H, WL), 1)
    is_first = lane == 0
    is_last = lane == (true_w - 1)

    def hsum(a):
        r1 = pltpu.roll(a, 1, 2)        # one wrapped neighbour
        r2 = pltpu.roll(a, WL - 1, 2)   # the other wrapped neighbour
        h = a + r1 + r2                 # exact for all interior columns
        # Reflection at the true image borders (convention-agnostic w.r.t.
        # roll direction; only two narrow column extracts).
        left = a[:, :, 0:1] + 2.0 * a[:, :, 1:2]
        right = (a[:, :, true_w - 1:true_w]
                 + 2.0 * a[:, :, true_w - 2:true_w - 1])
        return jnp.where(is_first, left, jnp.where(is_last, right, h))

    sx = hsum(vx)                 # 9 * mu_x
    sy = hsum(vy)                 # 9 * mu_y
    sxx = hsum(vxx)
    syy = hsum(vyy)
    sxy = hsum(vxy)

    # Raw 3x3 sums; the 1/9 and 1/81 pooling factors cancel in the ratio:
    #   mu_x*mu_y         = sx*sy / 81
    #   sigma_xy          = (9*sxy - sx*sy) / 81
    #   sigma_x + sigma_y = (9*(sxx+syy) - sx^2 - sy^2) / 81
    sxsy = sx * sy
    sx2 = sx * sx
    sy2 = sy * sy
    c1 = 81.0 * C1
    c2 = 81.0 * C2
    ssim_n = (2.0 * sxsy + c1) * (2.0 * (9.0 * sxy - sxsy) + c2)
    ssim_d = (sx2 + sy2 + c1) * (9.0 * (sxx + syy) - sx2 - sy2 + c2)
    inv_d = pl.reciprocal(ssim_d, approx=False)   # EUP slot; keeps VALU free
    out = jnp.clip((1.0 - ssim_n * inv_d) * 0.5, 0.0, 1.0)
    o_ref[...] = out.astype(o_ref.dtype)


def _round_up(v, m):
    return (v + m - 1) // m * m


def _vmem_capacity_bytes():
    """Generation-aware VMEM capacity (falls back to v7x's 64 MiB per core)."""
    try:
        info = pltpu.get_tpu_info()
        cap = getattr(info, "vmem_capacity_bytes", None)
        if cap:
            return int(cap)
    except Exception:
        pass
    return 64 * 1024 * 1024


def _pick_planes_per_block(P, H, WL, in_itemsize, out_itemsize, vmem_bytes):
    """Planes per grid step from a tiled-size VMEM budget; prefers an even
    grid length (2-TC balance on v7x) and allows a partial last block."""
    Ht = _round_up(H, 8)
    Hpt = _round_up(H + 2, 8)
    Wt = _round_up(WL, 128)
    # Per-plane footprint (tiled sizes): double-buffered x/y input blocks,
    # double-buffered output block, 2 f32 vertically-padded scratch planes,
    # ~12 live f32 plane-sized temporaries (products, v-sums, rolls, h-sums).
    per_plane = (2 * 2 * in_itemsize + 2 * out_itemsize) * Ht * Wt \
        + (2 + 12) * Hpt * Wt * 4
    budget = int(vmem_bytes * 0.45)
    cap = max(1, budget // per_plane)
    cap = min(cap, P)
    if P >= 2:
        # Keep >= 2 grid steps so the "parallel" axis can shard across two TCs.
        cap = min(cap, (P + 1) // 2)
    g = -(-P // cap)                     # ceil: number of grid steps
    if g > 1 and (g % 2 == 1) and g < P:
        g += 1                           # prefer an even step count (v7x)
    return max(1, -(-P // g))


def ssim_pallas(x, y, *, bf16_dma=False):
    """SSIM loss map, semantics identical to the PyTorch SSIM module.

    x, y: (N, C, H, W) float arrays -> (N, C, H, W) values in [0, 1].
    bf16_dma=True optionally DMAs f32 inputs as bf16 (halves input HBM bytes
    on bandwidth-bound parts, e.g. v5e); compute stays f32 in-kernel.
    """
    assert x.shape == y.shape and x.ndim == 4
    N, C, H, W = x.shape
    assert H >= 2 and W >= 2, "ReflectionPad2d(1) requires H, W >= 2"
    P = N * C
    WL = _round_up(W, 128)   # lane-dense blocks; no-op for monodepth W=640

    xf = x.reshape(P, H, W)
    yf = y.reshape(P, H, W)
    if bf16_dma and xf.dtype == jnp.float32:
        xf = xf.astype(jnp.bfloat16)
        yf = yf.astype(jnp.bfloat16)
    if WL != W:
        pad = ((0, 0), (0, 0), (0, WL - W))
        xf = jnp.pad(xf, pad)
        yf = jnp.pad(yf, pad)

    vmem_bytes = _vmem_capacity_bytes()
    B = _pick_planes_per_block(P, H, WL, xf.dtype.itemsize, x.dtype.itemsize,
                               vmem_bytes)
    grid_len = -(-P // B)

    hbm_bytes = (2 * xf.dtype.itemsize + x.dtype.itemsize) * P * H * WL
    cost = pl.CostEstimate(flops=60 * P * H * WL,
                           transcendentals=0,
                           bytes_accessed=hbm_bytes)

    kernel = functools.partial(_ssim_kernel, true_w=W)

    out = pl.pallas_call(
        kernel,
        out_shape=jax.ShapeDtypeStruct((P, H, WL), x.dtype),
        grid_spec=pltpu.PrefetchScalarGridSpec(
            num_scalar_prefetch=0,
            grid=(grid_len,),
            in_specs=[
                pl.BlockSpec((B, H, WL), lambda i: (i, 0, 0)),
                pl.BlockSpec((B, H, WL), lambda i: (i, 0, 0)),
            ],
            out_specs=pl.BlockSpec((B, H, WL), lambda i: (i, 0, 0)),
            scratch_shapes=[
                pltpu.VMEM((B, H + 2, WL), jnp.float32),
                pltpu.VMEM((B, H + 2, WL), jnp.float32),
            ],
        ),
        compiler_params=pltpu.CompilerParams(
            dimension_semantics=("parallel",),
            vmem_limit_bytes=int(vmem_bytes * 0.75),
        ),
        cost_estimate=cost,
    )(xf, yf)

    if WL != W:
        out = out[:, :, :W]
    return out.reshape(N, C, H, W)


def _ssim_ref(x, y):
    """Pure-JAX reference (mirrors the PyTorch module exactly)."""
    def pad(a):
        return jnp.pad(a, ((0, 0), (0, 0), (1, 1), (1, 1)), mode="reflect")

    def pool(a):
        H = a.shape[2] - 2
        W = a.shape[3] - 2
        s = 0.0
        for dy in range(3):
            for dx in range(3):
                s = s + a[:, :, dy:dy + H, dx:dx + W]
        return s / 9.0

    xp, yp = pad(x), pad(y)
    mu_x, mu_y = pool(xp), pool(yp)
    sigma_x = pool(xp ** 2) - mu_x ** 2
    sigma_y = pool(yp ** 2) - mu_y ** 2
    sigma_xy = pool(xp * yp) - mu_x * mu_y
    n = (2 * mu_x * mu_y + C1) * (2 * sigma_xy + C2)
    d = (mu_x ** 2 + mu_y ** 2 + C1) * (sigma_x + sigma_y + C2)
    return jnp.clip((1 - n / d) / 2, 0.0, 1.0)


if __name__ == "__main__":
    key = jax.random.PRNGKey(0)
    kx, ky = jax.random.split(key)
    N, C, H, W = 2, 4, 16, 16
    x = jax.random.uniform(kx, (N, C, H, W), dtype=jnp.float32)
    y = jax.random.uniform(ky, (N, C, H, W), dtype=jnp.float32)

    out = jax.block_until_ready(ssim_pallas(x, y))

    ref = _ssim_ref(x, y)
    np.testing.assert_allclose(np.asarray(out), np.asarray(ref),
                               rtol=1e-5, atol=1e-5)
    print("KERNEL_OK")
</pallas_src>

<mosaic_0001>
module attributes {stable_mosaic.version = 11 : i64} {
  func.func @_ssim_kernel(%arg0: i32, %arg1: memref<4x16x128xf32, #tpu.memory_space<vmem>>, %arg2: memref<4x16x128xf32, #tpu.memory_space<vmem>>, %arg3: memref<4x16x128xf32, #tpu.memory_space<vmem>>, %arg4: memref<4x18x128xf32, #tpu.memory_space<vmem>>, %arg5: memref<4x18x128xf32, #tpu.memory_space<vmem>>) attributes {dimension_semantics = [#tpu.dimension_semantics<parallel>], iteration_bounds = array<i64: 2>, scalar_prefetch = 0 : i64, scratch_operands = 2 : i64, tpu.core_type = #tpu.core_type<tc>, window_params = [{transform_indices = @transform_0, window_bounds = array<i64: 4, 16, 128>}, {transform_indices = @transform_1, window_bounds = array<i64: 4, 16, 128>}, {transform_indices = @transform_2, window_bounds = array<i64: 4, 16, 128>}]} {
    %c0 = arith.constant 0 : index
    %c0_0 = arith.constant 0 : index
    %c0_1 = arith.constant 0 : index
    %0 = vector.load %arg1[%c0, %c0_0, %c0_1] : memref<4x16x128xf32, #tpu.memory_space<vmem>>, vector<4x16x128xf32>
    %c0_2 = arith.constant 0 : index
    %c0_3 = arith.constant 0 : index
    %c0_4 = arith.constant 0 : index
    %1 = vector.load %arg2[%c0_2, %c0_3, %c0_4] : memref<4x16x128xf32, #tpu.memory_space<vmem>>, vector<4x16x128xf32>
    %c0_5 = arith.constant 0 : index
    %c1 = arith.constant 1 : index
    %c0_6 = arith.constant 0 : index
    %2 = vector.load %arg4[%c0_5, %c1, %c0_6] : memref<4x18x128xf32, #tpu.memory_space<vmem>>, vector<4x16x128xf32>
    tpu.vector_store %arg4[%c0_5, %c1, %c0_6], %0 {strides = array<i32>} : memref<4x18x128xf32, #tpu.memory_space<vmem>>, vector<4x16x128xf32>,
    %3 = vector.extract_strided_slice %0 {offsets = [0, 1, 0], sizes = [4, 1, 128], strides = [1, 1, 1]} : vector<4x16x128xf32> to vector<4x1x128xf32>
    %c0_7 = arith.constant 0 : index
    %c0_8 = arith.constant 0 : index
    %c0_9 = arith.constant 0 : index
    %4 = vector.load %arg4[%c0_7, %c0_8, %c0_9] : memref<4x18x128xf32, #tpu.memory_space<vmem>>, vector<4x1x128xf32>
    tpu.vector_store %arg4[%c0_7, %c0_8, %c0_9], %3 {strides = array<i32>} : memref<4x18x128xf32, #tpu.memory_space<vmem>>, vector<4x1x128xf32>,
    %5 = vector.extract_strided_slice %0 {offsets = [0, 14, 0], sizes = [4, 1, 128], strides = [1, 1, 1]} : vector<4x16x128xf32> to vector<4x1x128xf32>
    %c0_10 = arith.constant 0 : index
    %c17 = arith.constant 17 : index
    %c0_11 = arith.constant 0 : index
    %6 = vector.load %arg4[%c0_10, %c17, %c0_11] : memref<4x18x128xf32, #tpu.memory_space<vmem>>, vector<4x1x128xf32>
    tpu.vector_store %arg4[%c0_10, %c17, %c0_11], %5 {strides = array<i32>} : memref<4x18x128xf32, #tpu.memory_space<vmem>>, vector<4x1x128xf32>,
    %c0_12 = arith.constant 0 : index
    %c1_13 = arith.constant 1 : index
    %c0_14 = arith.constant 0 : index
    %7 = vector.load %arg5[%c0_12, %c1_13, %c0_14] : memref<4x18x128xf32, #tpu.memory_space<vmem>>, vector<4x16x128xf32>
    tpu.vector_store %arg5[%c0_12, %c1_13, %c0_14], %1 {strides = array<i32>} : memref<4x18x128xf32, #tpu.memory_space<vmem>>, vector<4x16x128xf32>,
    %8 = vector.extract_strided_slice %1 {offsets = [0, 1, 0], sizes = [4, 1, 128], strides = [1, 1, 1]} : vector<4x16x128xf32> to vector<4x1x128xf32>
    %c0_15 = arith.constant 0 : index
    %c0_16 = arith.constant 0 : index
    %c0_17 = arith.constant 0 : index
    %9 = vector.load %arg5[%c0_15, %c0_16, %c0_17] : memref<4x18x128xf32, #tpu.memory_space<vmem>>, vector<4x1x128xf32>
    tpu.vector_store %arg5[%c0_15, %c0_16, %c0_17], %8 {strides = array<i32>} : memref<4x18x128xf32, #tpu.memory_space<vmem>>, vector<4x1x128xf32>,
    %10 = vector.extract_strided_slice %1 {offsets = [0, 14, 0], sizes = [4, 1, 128], strides = [1, 1, 1]} : vector<4x16x128xf32> to vector<4x1x128xf32>
    %c0_18 = arith.constant 0 : index
    %c17_19 = arith.constant 17 : index
    %c0_20 = arith.constant 0 : index
    %11 = vector.load %arg5[%c0_18, %c17_19, %c0_20] : memref<4x18x128xf32, #tpu.memory_space<vmem>>, vector<4x1x128xf32>
    tpu.vector_store %arg5[%c0_18, %c17_19, %c0_20], %10 {strides = array<i32>} : memref<4x18x128xf32, #tpu.memory_space<vmem>>, vector<4x1x128xf32>,
    %c0_21 = arith.constant 0 : index
    %c0_22 = arith.constant 0 : index
    %c0_23 = arith.constant 0 : index
    %12 = vector.load %arg4[%c0_21, %c0_22, %c0_23] : memref<4x18x128xf32, #tpu.memory_space<vmem>>, vector<4x18x128xf32>
    %c0_24 = arith.constant 0 : index
    %c0_25 = arith.constant 0 : index
    %c0_26 = arith.constant 0 : index
    %13 = vector.load %arg5[%c0_24, %c0_25, %c0_26] : memref<4x18x128xf32, #tpu.memory_space<vmem>>, vector<4x18x128xf32>
    %14 = vector.extract_strided_slice %12 {offsets = [0, 0, 0], sizes = [4, 16, 128], strides = [1, 1, 1]} : vector<4x18x128xf32> to vector<4x16x128xf32>
    %15 = vector.extract_strided_slice %12 {offsets = [0, 1, 0], sizes = [4, 16, 128], strides = [1, 1, 1]} : vector<4x18x128xf32> to vector<4x16x128xf32>
    %16 = arith.addf %14, %15 : vector<4x16x128xf32>
    %17 = vector.extract_strided_slice %12 {offsets = [0, 2, 0], sizes = [4, 16, 128], strides = [1, 1, 1]} : vector<4x18x128xf32> to vector<4x16x128xf32>
    %18 = arith.addf %16, %17 : vector<4x16x128xf32>
    %19 = vector.extract_strided_slice %13 {offsets = [0, 0, 0], sizes = [4, 16, 128], strides = [1, 1, 1]} : vector<4x18x128xf32> to vector<4x16x128xf32>
    %20 = vector.extract_strided_slice %13 {offsets = [0, 1, 0], sizes = [4, 16, 128], strides = [1, 1, 1]} : vector<4x18x128xf32> to vector<4x16x128xf32>
    %21 = arith.addf %19, %20 : vector<4x16x128xf32>
    %22 = vector.extract_strided_slice %13 {offsets = [0, 2, 0], sizes = [4, 16, 128], strides = [1, 1, 1]} : vector<4x18x128xf32> to vector<4x16x128xf32>
    %23 = arith.addf %21, %22 : vector<4x16x128xf32>
    %24 = arith.mulf %12, %12 : vector<4x18x128xf32>
    %25 = vector.extract_strided_slice %24 {offsets = [0, 0, 0], sizes = [4, 16, 128], strides = [1, 1, 1]} : vector<4x18x128xf32> to vector<4x16x128xf32>
    %26 = vector.extract_strided_slice %24 {offsets = [0, 1, 0], sizes = [4, 16, 128], strides = [1, 1, 1]} : vector<4x18x128xf32> to vector<4x16x128xf32>
    %27 = arith.addf %25, %26 : vector<4x16x128xf32>
    %28 = vector.extract_strided_slice %24 {offsets = [0, 2, 0], sizes = [4, 16, 128], strides = [1, 1, 1]} : vector<4x18x128xf32> to vector<4x16x128xf32>
    %29 = arith.addf %27, %28 : vector<4x16x128xf32>
    %30 = arith.mulf %13, %13 : vector<4x18x128xf32>
    %31 = vector.extract_strided_slice %30 {offsets = [0, 0, 0], sizes = [4, 16, 128], strides = [1, 1, 1]} : vector<4x18x128xf32> to vector<4x16x128xf32>
    %32 = vector.extract_strided_slice %30 {offsets = [0, 1, 0], sizes = [4, 16, 128], strides = [1, 1, 1]} : vector<4x18x128xf32> to vector<4x16x128xf32>
    %33 = arith.addf %31, %32 : vector<4x16x128xf32>
    %34 = vector.extract_strided_slice %30 {offsets = [0, 2, 0], sizes = [4, 16, 128], strides = [1, 1, 1]} : vector<4x18x128xf32> to vector<4x16x128xf32>
    %35 = arith.addf %33, %34 : vector<4x16x128xf32>
    %36 = arith.mulf %12, %13 : vector<4x18x128xf32>
    %37 = vector.extract_strided_slice %36 {offsets = [0, 0, 0], sizes = [4, 16, 128], strides = [1, 1, 1]} : vector<4x18x128xf32> to vector<4x16x128xf32>
    %38 = vector.extract_strided_slice %36 {offsets = [0, 1, 0], sizes = [4, 16, 128], strides = [1, 1, 1]} : vector<4x18x128xf32> to vector<4x16x128xf32>
    %39 = arith.addf %37, %38 : vector<4x16x128xf32>
    %40 = vector.extract_strided_slice %36 {offsets = [0, 2, 0], sizes = [4, 16, 128], strides = [1, 1, 1]} : vector<4x18x128xf32> to vector<4x16x128xf32>
    %41 = arith.addf %39, %40 : vector<4x16x128xf32>
    %42 = tpu.iota {dimensions = array<i32: 1>} : vector<16x128xi32>
    %c0_i32 = arith.constant 0 : i32
    %43 = vector.broadcast %c0_i32 : i32 to vector<16x128xi32>
    %44 = arith.cmpi eq, %42, %43 : vector<16x128xi32>
    %c15_i32 = arith.constant 15 : i32
    %45 = vector.broadcast %c15_i32 : i32 to vector<16x128xi32>
    %46 = arith.cmpi eq, %42, %45 : vector<16x128xi32>
    %c1_i32 = arith.constant 1 : i32
    %47 = tpu.dynamic_rotate %18 by %c1_i32 dim 2 : vector<4x16x128xf32>, i32 -> vector<4x16x128xf32>
    %c127_i32 = arith.constant 127 : i32
    %48 = tpu.dynamic_rotate %18 by %c127_i32 dim 2 : vector<4x16x128xf32>, i32 -> vector<4x16x128xf32>
    %49 = arith.addf %18, %47 : vector<4x16x128xf32>
    %50 = arith.addf %49, %48 : vector<4x16x128xf32>
    %51 = vector.extract_strided_slice %18 {offsets = [0, 0, 0], sizes = [4, 16, 1], strides = [1, 1, 1]} : vector<4x16x128xf32> to vector<4x16x1xf32>
    %52 = vector.extract_strided_slice %18 {offsets = [0, 0, 1], sizes = [4, 16, 1], strides = [1, 1, 1]} : vector<4x16x128xf32> to vector<4x16x1xf32>
    %cst = arith.constant 2.000000e+00 : f32
    %53 = vector.broadcast %cst : f32 to vector<4x16x1xf32>
    %54 = arith.mulf %53, %52 : vector<4x16x1xf32>
    %55 = arith.addf %51, %54 : vector<4x16x1xf32>
    %56 = vector.extract_strided_slice %18 {offsets = [0, 0, 15], sizes = [4, 16, 1], strides = [1, 1, 1]} : vector<4x16x128xf32> to vector<4x16x1xf32>
    %57 = vector.extract_strided_slice %18 {offsets = [0, 0, 14], sizes = [4, 16, 1], strides = [1, 1, 1]} : vector<4x16x128xf32> to vector<4x16x1xf32>
    %cst_27 = arith.constant 2.000000e+00 : f32
    %58 = vector.broadcast %cst_27 : f32 to vector<4x16x1xf32>
    %59 = arith.mulf %58, %57 : vector<4x16x1xf32>
    %60 = arith.addf %56, %59 : vector<4x16x1xf32>
    %61 = vector.shape_cast %46 : vector<16x128xi1> to vector<1x16x128xi1>
    %62 = vector.broadcast %61 : vector<1x16x128xi1> to vector<4x16x128xi1>
    %63 = vector.shape_cast %60 : vector<4x16x1xf32> to vector<4x16x1xf32>
    %64 = vector.broadcast %63 : vector<4x16x1xf32> to vector<4x16x128xf32>
    %65 = arith.select %62, %64, %50 : vector<4x16x128xi1>, vector<4x16x128xf32>
    %66 = vector.shape_cast %44 : vector<16x128xi1> to vector<1x16x128xi1>
    %67 = vector.broadcast %66 : vector<1x16x128xi1> to vector<4x16x128xi1>
    %68 = vector.shape_cast %55 : vector<4x16x1xf32> to vector<4x16x1xf32>
    %69 = vector.broadcast %68 : vector<4x16x1xf32> to vector<4x16x128xf32>
    %70 = arith.select %67, %69, %65 : vector<4x16x128xi1>, vector<4x16x128xf32>
    %c1_i32_28 = arith.constant 1 : i32
    %71 = tpu.dynamic_rotate %23 by %c1_i32_28 dim 2 : vector<4x16x128xf32>, i32 -> vector<4x16x128xf32>
    %c127_i32_29 = arith.constant 127 : i32
    %72 = tpu.dynamic_rotate %23 by %c127_i32_29 dim 2 : vector<4x16x128xf32>, i32 -> vector<4x16x128xf32>
    %73 = arith.addf %23, %71 : vector<4x16x128xf32>
    %74 = arith.addf %73, %72 : vector<4x16x128xf32>
    %75 = vector.extract_strided_slice %23 {offsets = [0, 0, 0], sizes = [4, 16, 1], strides = [1, 1, 1]} : vector<4x16x128xf32> to vector<4x16x1xf32>
    %76 = vector.extract_strided_slice %23 {offsets = [0, 0, 1], sizes = [4, 16, 1], strides = [1, 1, 1]} : vector<4x16x128xf32> to vector<4x16x1xf32>
    %cst_30 = arith.constant 2.000000e+00 : f32
    %77 = vector.broadcast %cst_30 : f32 to vector<4x16x1xf32>
    %78 = arith.mulf %77, %76 : vector<4x16x1xf32>
    %79 = arith.addf %75, %78 : vector<4x16x1xf32>
    %80 = vector.extract_strided_slice %23 {offsets = [0, 0, 15], sizes = [4, 16, 1], strides = [1, 1, 1]} : vector<4x16x128xf32> to vector<4x16x1xf32>
    %81 = vector.extract_strided_slice %23 {offsets = [0, 0, 14], sizes = [4, 16, 1], strides = [1, 1, 1]} : vector<4x16x128xf32> to vector<4x16x1xf32>
    %cst_31 = arith.constant 2.000000e+00 : f32
    %82 = vector.broadcast %cst_31 : f32 to vector<4x16x1xf32>
    %83 = arith.mulf %82, %81 : vector<4x16x1xf32>
    %84 = arith.addf %80, %83 : vector<4x16x1xf32>
    %85 = vector.shape_cast %46 : vector<16x128xi1> to vector<1x16x128xi1>
    %86 = vector.broadcast %85 : vector<1x16x128xi1> to vector<4x16x128xi1>
    %87 = vector.shape_cast %84 : vector<4x16x1xf32> to vector<4x16x1xf32>
    %88 = vector.broadcast %87 : vector<4x16x1xf32> to vector<4x16x128xf32>
    %89 = arith.select %86, %88, %74 : vector<4x16x128xi1>, vector<4x16x128xf32>
    %90 = vector.shape_cast %44 : vector<16x128xi1> to vector<1x16x128xi1>
    %91 = vector.broadcast %90 : vector<1x16x128xi1> to vector<4x16x128xi1>
    %92 = vector.shape_cast %79 : vector<4x16x1xf32> to vector<4x16x1xf32>
    %93 = vector.broadcast %92 : vector<4x16x1xf32> to vector<4x16x128xf32>
    %94 = arith.select %91, %93, %89 : vector<4x16x128xi1>, vector<4x16x128xf32>
    %c1_i32_32 = arith.constant 1 : i32
    %95 = tpu.dynamic_rotate %29 by %c1_i32_32 dim 2 : vector<4x16x128xf32>, i32 -> vector<4x16x128xf32>
    %c127_i32_33 = arith.constant 127 : i32
    %96 = tpu.dynamic_rotate %29 by %c127_i32_33 dim 2 : vector<4x16x128xf32>, i32 -> vector<4x16x128xf32>
    %97 = arith.addf %29, %95 : vector<4x16x128xf32>
    %98 = arith.addf %97, %96 : vector<4x16x128xf32>
    %99 = vector.extract_strided_slice %29 {offsets = [0, 0, 0], sizes = [4, 16, 1], strides = [1, 1, 1]} : vector<4x16x128xf32> to vector<4x16x1xf32>
    %100 = vector.extract_strided_slice %29 {offsets = [0, 0, 1], sizes = [4, 16, 1], strides = [1, 1, 1]} : vector<4x16x128xf32> to vector<4x16x1xf32>
    %cst_34 = arith.constant 2.000000e+00 : f32
    %101 = vector.broadcast %cst_34 : f32 to vector<4x16x1xf32>
    %102 = arith.mulf %101, %100 : vector<4x16x1xf32>
    %103 = arith.addf %99, %102 : vector<4x16x1xf32>
    %104 = vector.extract_strided_slice %29 {offsets = [0, 0, 15], sizes = [4, 16, 1], strides = [1, 1, 1]} : vector<4x16x128xf32> to vector<4x16x1xf32>
    %105 = vector.extract_strided_slice %29 {offsets = [0, 0, 14], sizes = [4, 16, 1], strides = [1, 1, 1]} : vector<4x16x128xf32> to vector<4x16x1xf32>
    %cst_35 = arith.constant 2.000000e+00 : f32
    %106 = vector.broadcast %cst_35 : f32 to vector<4x16x1xf32>
    %107 = arith.mulf %106, %105 : vector<4x16x1xf32>
    %108 = arith.addf %104, %107 : vector<4x16x1xf32>
    %109 = vector.shape_cast %46 : vector<16x128xi1> to vector<1x16x128xi1>
    %110 = vector.broadcast %109 : vector<1x16x128xi1> to vector<4x16x128xi1>
    %111 = vector.shape_cast %108 : vector<4x16x1xf32> to vector<4x16x1xf32>
    %112 = vector.broadcast %111 : vector<4x16x1xf32> to vector<4x16x128xf32>
    %113 = arith.select %110, %112, %98 : vector<4x16x128xi1>, vector<4x16x128xf32>
    %114 = vector.shape_cast %44 : vector<16x128xi1> to vector<1x16x128xi1>
    %115 = vector.broadcast %114 : vector<1x16x128xi1> to vector<4x16x128xi1>
    %116 = vector.shape_cast %103 : vector<4x16x1xf32> to vector<4x16x1xf32>
    %117 = vector.broadcast %116 : vector<4x16x1xf32> to vector<4x16x128xf32>
    %118 = arith.select %115, %117, %113 : vector<4x16x128xi1>, vector<4x16x128xf32>
    %c1_i32_36 = arith.constant 1 : i32
    %119 = tpu.dynamic_rotate %35 by %c1_i32_36 dim 2 : vector<4x16x128xf32>, i32 -> vector<4x16x128xf32>
    %c127_i32_37 = arith.constant 127 : i32
    %120 = tpu.dynamic_rotate %35 by %c127_i32_37 dim 2 : vector<4x16x128xf32>, i32 -> vector<4x16x128xf32>
    %121 = arith.addf %35, %119 : vector<4x16x128xf32>
    %122 = arith.addf %121, %120 : vector<4x16x128xf32>
    %123 = vector.extract_strided_slice %35 {offsets = [0, 0, 0], sizes = [4, 16, 1], strides = [1, 1, 1]} : vector<4x16x128xf32> to vector<4x16x1xf32>
    %124 = vector.extract_strided_slice %35 {offsets = [0, 0, 1], sizes = [4, 16, 1], strides = [1, 1, 1]} : vector<4x16x128xf32> to vector<4x16x1xf32>
    %cst_38 = arith.constant 2.000000e+00 : f32
    %125 = vector.broadcast %cst_38 : f32 to vector<4x16x1xf32>
    %126 = arith.mulf %125, %124 : vector<4x16x1xf32>
    %127 = arith.addf %123, %126 : vector<4x16x1xf32>
    %128 = vector.extract_strided_slice %35 {offsets = [0, 0, 15], sizes = [4, 16, 1], strides = [1, 1, 1]} : vector<4x16x128xf32> to vector<4x16x1xf32>
    %129 = vector.extract_strided_slice %35 {offsets = [0, 0, 14], sizes = [4, 16, 1], strides = [1, 1, 1]} : vector<4x16x128xf32> to vector<4x16x1xf32>
    %cst_39 = arith.constant 2.000000e+00 : f32
    %130 = vector.broadcast %cst_39 : f32 to vector<4x16x1xf32>
    %131 = arith.mulf %130, %129 : vector<4x16x1xf32>
    %132 = arith.addf %128, %131 : vector<4x16x1xf32>
    %133 = vector.shape_cast %46 : vector<16x128xi1> to vector<1x16x128xi1>
    %134 = vector.broadcast %133 : vector<1x16x128xi1> to vector<4x16x128xi1>
    %135 = vector.shape_cast %132 : vector<4x16x1xf32> to vector<4x16x1xf32>
    %136 = vector.broadcast %135 : vector<4x16x1xf32> to vector<4x16x128xf32>
    %137 = arith.select %134, %136, %122 : vector<4x16x128xi1>, vector<4x16x128xf32>
    %138 = vector.shape_cast %44 : vector<16x128xi1> to vector<1x16x128xi1>
    %139 = vector.broadcast %138 : vector<1x16x128xi1> to vector<4x16x128xi1>
    %140 = vector.shape_cast %127 : vector<4x16x1xf32> to vector<4x16x1xf32>
    %141 = vector.broadcast %140 : vector<4x16x1xf32> to vector<4x16x128xf32>
    %142 = arith.select %139, %141, %137 : vector<4x16x128xi1>, vector<4x16x128xf32>
    %c1_i32_40 = arith.constant 1 : i32
    %143 = tpu.dynamic_rotate %41 by %c1_i32_40 dim 2 : vector<4x16x128xf32>, i32 -> vector<4x16x128xf32>
    %c127_i32_41 = arith.constant 127 : i32
    %144 = tpu.dynamic_rotate %41 by %c127_i32_41 dim 2 : vector<4x16x128xf32>, i32 -> vector<4x16x128xf32>
    %145 = arith.addf %41, %143 : vector<4x16x128xf32>
    %146 = arith.addf %145, %144 : vector<4x16x128xf32>
    %147 = vector.extract_strided_slice %41 {offsets = [0, 0, 0], sizes = [4, 16, 1], strides = [1, 1, 1]} : vector<4x16x128xf32> to vector<4x16x1xf32>
    %148 = vector.extract_strided_slice %41 {offsets = [0, 0, 1], sizes = [4, 16, 1], strides = [1, 1, 1]} : vector<4x16x128xf32> to vector<4x16x1xf32>
    %cst_42 = arith.constant 2.000000e+00 : f32
    %149 = vector.broadcast %cst_42 : f32 to vector<4x16x1xf32>
    %150 = arith.mulf %149, %148 : vector<4x16x1xf32>
    %151 = arith.addf %147, %150 : vector<4x16x1xf32>
    %152 = vector.extract_strided_slice %41 {offsets = [0, 0, 15], sizes = [4, 16, 1], strides = [1, 1, 1]} : vector<4x16x128xf32> to vector<4x16x1xf32>
    %153 = vector.extract_strided_slice %41 {offsets = [0, 0, 14], sizes = [4, 16, 1], strides = [1, 1, 1]} : vector<4x16x128xf32> to vector<4x16x1xf32>
    %cst_43 = arith.constant 2.000000e+00 : f32
    %154 = vector.broadcast %cst_43 : f32 to vector<4x16x1xf32>
    %155 = arith.mulf %154, %153 : vector<4x16x1xf32>
    %156 = arith.addf %152, %155 : vector<4x16x1xf32>
    %157 = vector.shape_cast %46 : vector<16x128xi1> to vector<1x16x128xi1>
    %158 = vector.broadcast %157 : vector<1x16x128xi1> to vector<4x16x128xi1>
    %159 = vector.shape_cast %156 : vector<4x16x1xf32> to vector<4x16x1xf32>
    %160 = vector.broadcast %159 : vector<4x16x1xf32> to vector<4x16x128xf32>
    %161 = arith.select %158, %160, %146 : vector<4x16x128xi1>, vector<4x16x128xf32>
    %162 = vector.shape_cast %44 : vector<16x128xi1> to vector<1x16x128xi1>
    %163 = vector.broadcast %162 : vector<1x16x128xi1> to vector<4x16x128xi1>
    %164 = vector.shape_cast %151 : vector<4x16x1xf32> to vector<4x16x1xf32>
    %165 = vector.broadcast %164 : vector<4x16x1xf32> to vector<4x16x128xf32>
    %166 = arith.select %163, %165, %161 : vector<4x16x128xi1>, vector<4x16x128xf32>
    %167 = arith.mulf %70, %94 : vector<4x16x128xf32>
    %168 = arith.mulf %70, %70 : vector<4x16x128xf32>
    %169 = arith.mulf %94, %94 : vector<4x16x128xf32>
    %cst_44 = arith.constant 2.000000e+00 : f32
    %170 = vector.broadcast %cst_44 : f32 to vector<4x16x128xf32>
    %171 = arith.mulf %170, %167 : vector<4x16x128xf32>
    %cst_45 = arith.constant 8.100000e-03 : f32
    %172 = vector.broadcast %cst_45 : f32 to vector<4x16x128xf32>
    %173 = arith.addf %171, %172 : vector<4x16x128xf32>
    %cst_46 = arith.constant 9.000000e+00 : f32
    %174 = vector.broadcast %cst_46 : f32 to vector<4x16x128xf32>
    %175 = arith.mulf %174, %166 : vector<4x16x128xf32>
    %176 = arith.subf %175, %167 : vector<4x16x128xf32>
    %cst_47 = arith.constant 2.000000e+00 : f32
    %177 = vector.broadcast %cst_47 : f32 to vector<4x16x128xf32>
    %178 = arith.mulf %177, %176 : vector<4x16x128xf32>
    %cst_48 = arith.constant 7.290000e-02 : f32
    %179 = vector.broadcast %cst_48 : f32 to vector<4x16x128xf32>
    %180 = arith.addf %178, %179 : vector<4x16x128xf32>
    %181 = arith.mulf %173, %180 : vector<4x16x128xf32>
    %182 = arith.addf %168, %169 : vector<4x16x128xf32>
    %cst_49 = arith.constant 8.100000e-03 : f32
    %183 = vector.broadcast %cst_49 : f32 to vector<4x16x128xf32>
    %184 = arith.addf %182, %183 : vector<4x16x128xf32>
    %185 = arith.addf %118, %142 : vector<4x16x128xf32>
    %cst_50 = arith.constant 9.000000e+00 : f32
    %186 = vector.broadcast %cst_50 : f32 to vector<4x16x128xf32>
    %187 = arith.mulf %186, %185 : vector<4x16x128xf32>
    %188 = arith.subf %187, %168 : vector<4x16x128xf32>
    %189 = arith.subf %188, %169 : vector<4x16x128xf32>
    %cst_51 = arith.constant 7.290000e-02 : f32
    %190 = vector.broadcast %cst_51 : f32 to vector<4x16x128xf32>
    %191 = arith.addf %189, %190 : vector<4x16x128xf32>
    %192 = arith.mulf %184, %191 : vector<4x16x128xf32>
    %193 = tpu.reciprocal %192 : vector<4x16x128xf32> -> vector<4x16x128xf32>
    %194 = arith.mulf %181, %193 : vector<4x16x128xf32>
    %cst_52 = arith.constant 1.000000e+00 : f32
    %195 = vector.broadcast %cst_52 : f32 to vector<4x16x128xf32>
    %196 = arith.subf %195, %194 : vector<4x16x128xf32>
    %cst_53 = arith.constant 5.000000e-01 : f32
    %197 = vector.broadcast %cst_53 : f32 to vector<4x16x128xf32>
    %198 = arith.mulf %196, %197 : vector<4x16x128xf32>
    %cst_54 = arith.constant 0.000000e+00 : f32
    %cst_55 = arith.constant 1.000000e+00 : f32
    %199 = vector.broadcast %cst_54 : f32 to vector<4x16x128xf32>
    %200 = arith.maximumf %199, %198 : vector<4x16x128xf32>
    %201 = vector.broadcast %cst_55 : f32 to vector<4x16x128xf32>
    %202 = arith.minimumf %201, %200 : vector<4x16x128xf32>
    %c0_56 = arith.constant 0 : index
    %c0_57 = arith.constant 0 : index
    %c0_58 = arith.constant 0 : index
    %203 = vector.load %arg3[%c0_56, %c0_57, %c0_58] : memref<4x16x128xf32, #tpu.memory_space<vmem>>, vector<4x16x128xf32>
    tpu.vector_store %arg3[%c0_56, %c0_57, %c0_58], %202 {strides = array<i32>} : memref<4x16x128xf32, #tpu.memory_space<vmem>>, vector<4x16x128xf32>,
    return
  }
  func.func @transform_0(%arg0: i32) -> (i32, i32, i32) {
    %c0_i32 = arith.constant 0 : i32
    %c0_i32_0 = arith.constant 0 : i32
    %c0_i32_1 = arith.constant 0 : i32
    return %arg0, %c0_i32, %c0_i32_0 : i32, i32, i32
  }
  func.func @transform_1(%arg0: i32) -> (i32, i32, i32) {
    %c0_i32 = arith.constant 0 : i32
    %c0_i32_0 = arith.constant 0 : i32
    %c0_i32_1 = arith.constant 0 : i32
    return %arg0, %c0_i32, %c0_i32_0 : i32, i32, i32
  }
  func.func @transform_2(%arg0: i32) -> (i32, i32, i32) {
    %c0_i32 = arith.constant 0 : i32
    %c0_i32_0 = arith.constant 0 : i32
    %c0_i32_1 = arith.constant 0 : i32
    return %arg0, %c0_i32, %c0_i32_0 : i32, i32, i32
  }
}

</mosaic_0001>

<llo_original>
// kernel: tpu_custom_call.1
$region0: #{tpu_custom_call.1}
  #allocation0 [shape = 'u32[]', space=smem, size = 0x4, offset = 0x4, fixed_abs, tag = 'smem constant byte address 0x4 - core index']
  #allocation1 [shape = 'u32[72,128]{1,0:T(1,128)}', space=vmem, size = 0x9000, scoped, tag = 'internal scratch']
  #allocation2 [shape = 'f32[4,18,128]{2,1,0:T(8,128)}', space=vmem, size = 0xc000, scoped, tag = 'scratch operand']
  #allocation3 [shape = 'f32[4,18,128]{2,1,0:T(8,128)}', space=vmem, size = 0xc000, scoped, tag = 'scratch operand']
  %s0 = inlined_call_operand.hbm [shape: f32[8,16,128], index: 0, kind: input, shape index: {}]
  %s1 = inlined_call_operand.hbm [shape: f32[8,16,128], index: 1, kind: input, shape index: {}]
  %s2 = inlined_call_operand.hbm [shape: f32[8,16,128], index: 2, kind: output, shape index: {}]
  %s3 = sld [smem:[#allocation0]]
  $region49: #{tpu_custom_call.1} parent=0
    _
  %s5 = ssub.s32 1, %s3
  %s6 = scalar_select 0, %s5, %s3
  $region1: #{tpu_custom_call.1} parent=0
    #allocation4 [shape = 'u8[65536]{0}', space=vmem, size = 0x10000, scoped, tag = 'input window, operand 0']
    #allocation5 [shape = 's32[2]{0}', space=sflag, size = 0x8, scoped, tag = 'scoped memory for tpu_custom_call.1']
    #allocation6 [shape = 's32[2]{0}', space=sflag, size = 0x8, scoped, tag = 'scoped memory for tpu_custom_call.1']
    #allocation7 [shape = 'u8[65536]{0}', space=vmem, size = 0x10000, scoped, tag = 'input window, operand 1']
    #allocation8 [shape = 's32[2]{0}', space=sflag, size = 0x8, scoped, tag = 'scoped memory for tpu_custom_call.1']
    #allocation9 [shape = 'u8[65536]{0}', space=vmem, size = 0x10000, scoped, tag = 'output window, operand 0']
    %7 = vsyncpa [#allocation5], 0
    %s8 = scalar_lea.sflag [#allocation5], 1
    %9 = vsyncpa %s8, 0
    %10 = vsyncpa [#allocation8], 0
    %s11 = scalar_lea.sflag [#allocation8], 1
    %12 = vsyncpa %s11, 0
    %13 = vsyncpa [#allocation6], 0
    %s14 = scalar_lea.sflag [#allocation6], 1
    %15 = vsyncpa %s14, 0
    loop: start=0, step=1, limit=4
    $region2: #{tpu_custom_call.1} parent=1 // loop_pre_header
      _
    $region3: #{tpu_custom_call.1} parent=1 // loop_header
      %s17 = sphi 0, %s21
      %p18 = scmp.ge.s32.totalorder %s17, 4
      %s27 = sphi 0, %s29
      %s30 = sphi 0, %s27
      %s31 = sphi 0, %s30
      %s47 = sphi 0, %s31
      %s53 = sphi 0, %s55
      %s56 = sphi 0, %s53
      %s57 = sphi 0, %s56
      %s73 = sphi 0, %s57
      %s79 = sphi 0, %s81
      %s82 = sphi 0, %s79
      %s83 = sphi 0, %s82
      %s99 = sphi 0, %s83
    $region4: #{tpu_custom_call.1} parent=1 // loop_header_branch
      %20 = sbr.rel (%p18) target = $region8
    $region5: #{tpu_custom_call.1} parent=1 // loop_body
      %s22 = ssub.s32 %s17, 1
      %s23 = ssub.s32 %s17, 2
      %s24 = sadd.s32 %s17, 1
      %s25 = ssub.s32 %s17, %s24
      %p26 = scmp.eq.s32.totalorder %s25, 0
      %s28 = sadd.s32 %s27, 1
      %s29 = scalar_select %p26, %s27, %s28
      %p32 = pneg %p26
      %p33 = scmp.eq.s32.totalorder %s17, 1
      %p34 = por %p32, %p33
      %p35 = scmp.ne.s32.totalorder %s27, %s30
      %p36 = scmp.eq.s32.totalorder %s17, 0
      %p37 = por %p35, %p36
      %p38 = scmp.ne.s32.totalorder %s27, %s30
      %p39 = scmp.eq.s32.totalorder %s22, 1
      %p40 = por %p38, %p39
      %p41 = scmp.ne.s32.totalorder %s30, %s31
      %p42 = scmp.eq.s32.totalorder %s22, 0
      %p43 = por %p41, %p42
      %p44 = scmp.ne.s32.totalorder %s30, %s31
      %p45 = scmp.eq.s32.totalorder %s23, 1
      %p46 = por %p44, %p45
      %p48 = scmp.ne.s32.totalorder %s31, %s47
      %p49 = scmp.eq.s32.totalorder %s23, 0
      %p50 = por %p48, %p49
      %s51 = ssub.s32 %s17, %s24
      %p52 = scmp.eq.s32.totalorder %s51, 0
      %s54 = sadd.s32 %s53, 1
      %s55 = scalar_select %p52, %s53, %s54
      %p58 = pneg %p52
      %p59 = scmp.eq.s32.totalorder %s17, 1
      %p60 = por %p58, %p59
      %p61 = scmp.ne.s32.totalorder %s53, %s56
      %p62 = scmp.eq.s32.totalorder %s17, 0
      %p63 = por %p61, %p62
      %p64 = scmp.ne.s32.totalorder %s53, %s56
      %p65 = scmp.eq.s32.totalorder %s22, 1
      %p66 = por %p64, %p65
      %p67 = scmp.ne.s32.totalorder %s56, %s57
      %p68 = scmp.eq.s32.totalorder %s22, 0
      %p69 = por %p67, %p68
      %p70 = scmp.ne.s32.totalorder %s56, %s57
      %p71 = scmp.eq.s32.totalorder %s23, 1
      %p72 = por %p70, %p71
      %p74 = scmp.ne.s32.totalorder %s57, %s73
      %p75 = scmp.eq.s32.totalorder %s23, 0
      %p76 = por %p74, %p75
      %s77 = ssub.s32 %s17, %s24
      %p78 = scmp.eq.s32.totalorder %s77, 0
      %s80 = sadd.s32 %s79, 1
      %s81 = scalar_select %p78, %s79, %s80
      %p84 = pneg %p78
      %p85 = scmp.eq.s32.totalorder %s17, 1
      %p86 = por %p84, %p85
      %p87 = scmp.ne.s32.totalorder %s79, %s82
      %p88 = scmp.eq.s32.totalorder %s17, 0
      %p89 = por %p87, %p88
      %p90 = scmp.ne.s32.totalorder %s79, %s82
      %p91 = scmp.eq.s32.totalorder %s22, 1
      %p92 = por %p90, %p91
      %p93 = scmp.ne.s32.totalorder %s82, %s83
      %p94 = scmp.eq.s32.totalorder %s22, 0
      %p95 = por %p93, %p94
      %p96 = scmp.ne.s32.totalorder %s82, %s83
      %p97 = scmp.eq.s32.totalorder %s23, 1
      %p98 = por %p96, %p97
      %p100 = scmp.ne.s32.totalorder %s83, %s99
      %p101 = scmp.eq.s32.totalorder %s23, 0
      %p102 = por %p100, %p101
      %p103 = scmp.le.s32.totalorder 1, %s17
      %p104 = scmp.lt.s32.totalorder %s17, 3
      %p105 = pnand %p103, %p104
      %p106 = pneg %p105
      // Predicated region
      $region9: #{tpu_custom_call.1} parent=5 // pred_check
        _
      $region10: #{tpu_custom_call.1} parent=5 // pred_check_branch
        %108 = sbr.rel (%p105) target = $region12
      $region11: #{tpu_custom_call.1} parent=5 // pred_region
        %s109 = ssub.s32 %s17, 1
      $region12: #{tpu_custom_call.1} parent=5 // pred_fallthru
        _
      %p110 = scmp.lt.s32.totalorder %s17, 2
      // Predicated region
      $region13: #{tpu_custom_call.1} parent=5 // pred_check
        %p111 = pneg %p110
      $region14: #{tpu_custom_call.1} parent=5 // pred_check_branch
        %113 = sbr.rel (%p111) target = $region16
      $region15: #{tpu_custom_call.1} parent=5 // pred_region
        // Predicated region
        $region17: #{tpu_custom_call.1} parent=15 // pred_check
          %p114 = pneg %p37
        $region18: #{tpu_custom_call.1} parent=15 // pred_check_branch
          %116 = sbr.rel (%p114) target = $region20
        $region19: #{tpu_custom_call.1} parent=15 // pred_region
          %s117 = sand.u32 %s27, 1
          %s118 = scalar_lea.sflag [#allocation5], %s117
          %s119 = sand.u32 %s27, 1
          %s120 = smul.addr %s119, 64
          %s121 = scalar_lea.vmem [#allocation4], %s120
          %s122 = smul.u32 4, %s17
          %124 = vsyncadd %s118, 0
          %s125 = smul.addr %s122, 2
          %s126 = smul.addr %s125, 8
          %s127 = scalar_lea.hbm %s0, %s126
          %s128 = sshll.u32 %s127, 4
          %s129 = int_to_ptr.hbm [resolvable:$true] %s128
          %s130 = sshll.u32 %s121, 4
          %s131 = int_to_ptr.vmem [resolvable:$true] %s130
          %136 = dma.hbm_to_vmem [thread:$0]  %s129, 1024, %s131, %s118, 128, 128, 8
        $region20: #{tpu_custom_call.1} parent=15 // pred_fallthru
          _
        // Predicated region
        $region21: #{tpu_custom_call.1} parent=15 // pred_check
          %p137 = pneg %p63
        $region22: #{tpu_custom_call.1} parent=15 // pred_check_branch
          %139 = sbr.rel (%p137) target = $region24
        $region23: #{tpu_custom_call.1} parent=15 // pred_region
          %s140 = sand.u32 %s53, 1
          %s141 = scalar_lea.sflag [#allocation8], %s140
          %s142 = sand.u32 %s53, 1
          %s143 = smul.addr %s142, 64
          %s144 = scalar_lea.vmem [#allocation7], %s143
          %s145 = smul.u32 4, %s17
          %147 = vsyncadd %s141, 0
          %s148 = smul.addr %s145, 2
          %s149 = smul.addr %s148, 8
          %s150 = scalar_lea.hbm %s1, %s149
          %s151 = sshll.u32 %s150, 4
          %s152 = int_to_ptr.hbm [resolvable:$true] %s151
          %s153 = sshll.u32 %s144, 4
          %s154 = int_to_ptr.vmem [resolvable:$true] %s153
          %159 = dma.hbm_to_vmem [thread:$0]  %s152, 1024, %s154, %s141, 128, 128, 8
        $region24: #{tpu_custom_call.1} parent=15 // pred_fallthru
          _
      $region16: #{tpu_custom_call.1} parent=5 // pred_fallthru
        _
      %p160 = scmp.le.s32.totalorder 1, %s17
      %p161 = scmp.lt.s32.totalorder %s17, 3
      %p162 = pnand %p160, %p161
      %p163 = pneg %p162
      // Predicated region
      $region25: #{tpu_custom_call.1} parent=5 // pred_check
        _
      $region26: #{tpu_custom_call.1} parent=5 // pred_check_branch
        %165 = sbr.rel (%p162) target = $region28
      $region27: #{tpu_custom_call.1} parent=5 // pred_region
        %s166 = ssub.s32 %s17, 1
        %s167 = sand.u32 %s30, 1
        %s168 = scalar_lea.sflag [#allocation5], %s167
        %s169 = sand.u32 %s30, 1
        %s170 = smul.addr %s169, 64
        %s171 = scalar_lea.vmem [#allocation4], %s170
        // Predicated region
        $region29: #{tpu_custom_call.1} parent=27 // pred_check
          %p172 = pneg %p43
        $region30: #{tpu_custom_call.1} parent=27 // pred_check_branch
          %174 = sbr.rel (%p172) target = $region32
        $region31: #{tpu_custom_call.1} parent=27 // pred_region
          %176 = dma.done %s168, 1024
        $region32: #{tpu_custom_call.1} parent=27 // pred_fallthru
          _
        %s177 = sand.u32 %s56, 1
        %s178 = scalar_lea.sflag [#allocation8], %s177
        %s179 = sand.u32 %s56, 1
        %s180 = smul.addr %s179, 64
        %s181 = scalar_lea.vmem [#allocation7], %s180
        // Predicated region
        $region33: #{tpu_custom_call.1} parent=27 // pred_check
          %p182 = pneg %p69
        $region34: #{tpu_custom_call.1} parent=27 // pred_check_branch
          %184 = sbr.rel (%p182) target = $region36
        $region35: #{tpu_custom_call.1} parent=27 // pred_region
          %186 = dma.done %s178, 1024
        $region36: #{tpu_custom_call.1} parent=27 // pred_fallthru
          _
        %s187 = sand.u32 %s30, 1
        %s188 = scalar_lea.sflag [#allocation5], %s187
        %s189 = sand.u32 %s30, 1
        %s190 = smul.addr %s189, 64
        %s191 = scalar_lea.vmem [#allocation4], %s190
        %p192 = pneg %p43
        %p193 = pneg %p40
        %s194 = sand.u32 %s56, 1
        %s195 = scalar_lea.sflag [#allocation8], %s194
        %s196 = sand.u32 %s56, 1
        %s197 = smul.addr %s196, 64
        %s198 = scalar_lea.vmem [#allocation7], %s197
        %p199 = pneg %p69
        %p200 = pneg %p66
        %p201 = pneg %p95
        %p202 = pneg %p92
        %s203 = sand.u32 %s82, 1
        %s204 = scalar_lea.sflag [#allocation6], %s203
        %s205 = sand.u32 %s82, 1
        %s206 = smul.addr %s205, 64
        %s207 = scalar_lea.vmem [#allocation9], %s206
        %s208 = smul.u32 4, %s22
        %s209 = smul.u32 4, %s22
        %s210 = smul.u32 4, %s22
        %v211 = vld [vmem:[%s171] sm:$0xff]
        %v212 = vld [vmem:[%s171 + $0x8] sm:$0xff]
        %v213 = vld [vmem:[%s171 + $0x10] sm:$0xff]
        %v214 = vld [vmem:[%s171 + $0x18] sm:$0xff]
        %v215 = vld [vmem:[%s171 + $0x20] sm:$0xff]
        %v216 = vld [vmem:[%s171 + $0x28] sm:$0xff]
        %v217 = vld [vmem:[%s171 + $0x30] sm:$0xff]
        %v218 = vld [vmem:[%s171 + $0x38] sm:$0xff]
        %v219 = vld [vmem:[%s181] sm:$0xff]
        %v220 = vld [vmem:[%s181 + $0x8] sm:$0xff]
        %v221 = vld [vmem:[%s181 + $0x10] sm:$0xff]
        %v222 = vld [vmem:[%s181 + $0x18] sm:$0xff]
        %v223 = vld [vmem:[%s181 + $0x20] sm:$0xff]
        %v224 = vld [vmem:[%s181 + $0x28] sm:$0xff]
        %v225 = vld [vmem:[%s181 + $0x30] sm:$0xff]
        %v226 = vld [vmem:[%s181 + $0x38] sm:$0xff]
        %227 = vst [vmem:[#allocation2 + $0x1] sm:$0xff] %v211
        %228 = vst [vmem:[#allocation2 + $0x9] sm:$0xff] %v212
        %229 = vst [vmem:[#allocation2 + $0x19] sm:$0xff] %v213
        %230 = vst [vmem:[#allocation2 + $0x21] sm:$0xff] %v214
        %231 = vst [vmem:[#allocation2 + $0x31] sm:$0xff] %v215
        %232 = vst [vmem:[#allocation2 + $0x39] sm:$0xff] %v216
        %233 = vst [vmem:[#allocation2 + $0x49] sm:$0xff] %v217
        %234 = vst [vmem:[#allocation2 + $0x51] sm:$0xff] %v218
        %235 = vst [vmem:[#allocation2 - $0x1] sm:$0x2] %v211
        %236 = vst [vmem:[#allocation2 + $0x17] sm:$0x2] %v213
        %237 = vst [vmem:[#allocation2 + $0x2f] sm:$0x2] %v215
        %238 = vst [vmem:[#allocation2 + $0x47] sm:$0x2] %v217
        %239 = vst [vmem:[#allocation2 + $0xb] sm:$0x40] %v212
        %240 = vst [vmem:[#allocation2 + $0x23] sm:$0x40] %v214
        %241 = vst [vmem:[#allocation2 + $0x3b] sm:$0x40] %v216
        %242 = vst [vmem:[#allocation2 + $0x53] sm:$0x40] %v218
        %243 = vst [vmem:[#allocation3 + $0x1] sm:$0xff] %v219
        %244 = vst [vmem:[#allocation3 + $0x9] sm:$0xff] %v220
        %245 = vst [vmem:[#allocation3 + $0x19] sm:$0xff] %v221
        %246 = vst [vmem:[#allocation3 + $0x21] sm:$0xff] %v222
        %247 = vst [vmem:[#allocation3 + $0x31] sm:$0xff] %v223
        %248 = vst [vmem:[#allocation3 + $0x39] sm:$0xff] %v224
        %249 = vst [vmem:[#allocation3 + $0x49] sm:$0xff] %v225
        %250 = vst [vmem:[#allocation3 + $0x51] sm:$0xff] %v226
        %251 = vst [vmem:[#allocation3 - $0x1] sm:$0x2] %v219
        %252 = vst [vmem:[#allocation3 + $0x17] sm:$0x2] %v221
        %253 = vst [vmem:[#allocation3 + $0x2f] sm:$0x2] %v223
        %254 = vst [vmem:[#allocation3 + $0x47] sm:$0x2] %v225
        %255 = vst [vmem:[#allocation3 + $0xb] sm:$0x40] %v220
        %256 = vst [vmem:[#allocation3 + $0x23] sm:$0x40] %v222
        %257 = vst [vmem:[#allocation3 + $0x3b] sm:$0x40] %v224
        %258 = vst [vmem:[#allocation3 + $0x53] sm:$0x40] %v226
        %v259 = vld [vmem:[#allocation2] sm:$0xff]
        %v260 = vld [vmem:[#allocation2 + $0x8] sm:$0xff]
        %v261 = vld [vmem:[#allocation2 + $0x10] sm:$0x3]
        %v262 = vld [vmem:[#allocation2 + $0x18] sm:$0xff]
        %v263 = vld [vmem:[#allocation2 + $0x20] sm:$0xff]
        %v264 = vld [vmem:[#allocation2 + $0x28] sm:$0x3]
        %v265 = vld [vmem:[#allocation2 + $0x30] sm:$0xff]
        %v266 = vld [vmem:[#allocation2 + $0x38] sm:$0xff]
        %v267 = vld [vmem:[#allocation2 + $0x40] sm:$0x3]
        %v268 = vld [vmem:[#allocation2 + $0x48] sm:$0xff]
        %v269 = vld [vmem:[#allocation2 + $0x50] sm:$0xff]
        %v270 = vld [vmem:[#allocation2 + $0x58] sm:$0x3]
        %v271 = vld [vmem:[#allocation3] sm:$0xff]
        %v272 = vld [vmem:[#allocation3 + $0x8] sm:$0xff]
        %v273 = vld [vmem:[#allocation3 + $0x10] sm:$0x3]
        %v274 = vld [vmem:[#allocation3 + $0x18] sm:$0xff]
        %v275 = vld [vmem:[#allocation3 + $0x20] sm:$0xff]
        %v276 = vld [vmem:[#allocation3 + $0x28] sm:$0x3]
        %v277 = vld [vmem:[#allocation3 + $0x30] sm:$0xff]
        %v278 = vld [vmem:[#allocation3 + $0x38] sm:$0xff]
        %v279 = vld [vmem:[#allocation3 + $0x40] sm:$0x3]
        %v280 = vld [vmem:[#allocation3 + $0x48] sm:$0xff]
        %v281 = vld [vmem:[#allocation3 + $0x50] sm:$0xff]
        %v282 = vld [vmem:[#allocation3 + $0x58] sm:$0x3]
        %vm295 = vcmask 1046528
        %v296 = vrot.slane %v259, 1
        %v297 = vrot.slane %v260, 1
        %v298 = vsel %vm295, %v296, %v297
        %v299 = vrot.slane %v261, 1
        %v300 = vsel %vm295, %v297, %v299
        %v301 = vrot.slane %v262, 1
        %v302 = vrot.slane %v263, 1
        %v303 = vsel %vm295, %v301, %v302
        %v304 = vrot.slane %v264, 1
        %v305 = vsel %vm295, %v302, %v304
        %v306 = vrot.slane %v265, 1
        %v307 = vrot.slane %v266, 1
        %v308 = vsel %vm295, %v306, %v307
        %v309 = vrot.slane %v267, 1
        %v310 = vsel %vm295, %v307, %v309
        %v311 = vrot.slane %v268, 1
        %v312 = vrot.slane %v269, 1
        %v313 = vsel %vm295, %v311, %v312
        %v314 = vrot.slane %v270, 1
        %v315 = vsel %vm295, %v312, %v314
        %v324 = vadd.f32 %v259, %v298
        %v325 = vadd.f32 %v260, %v300
        %v326 = vadd.f32 %v262, %v303
        %v327 = vadd.f32 %v263, %v305
        %v328 = vadd.f32 %v265, %v308
        %v329 = vadd.f32 %v266, %v310
        %v330 = vadd.f32 %v268, %v313
        %v331 = vadd.f32 %v269, %v315
        %vm332 = vcmask 1045504
        %v333 = vrot.slane %v259, 2
        %v334 = vrot.slane %v260, 2
        %v335 = vsel %vm332, %v333, %v334
        %v336 = vrot.slane %v261, 2
        %v337 = vsel %vm332, %v334, %v336
        %v338 = vrot.slane %v262, 2
        %v339 = vrot.slane %v263, 2
        %v340 = vsel %vm332, %v338, %v339
        %v341 = vrot.slane %v264, 2
        %v342 = vsel %vm332, %v339, %v341
        %v343 = vrot.slane %v265, 2
        %v344 = vrot.slane %v266, 2
        %v345 = vsel %vm332, %v343, %v344
        %v346 = vrot.slane %v267, 2
        %v347 = vsel %vm332, %v344, %v346
        %v348 = vrot.slane %v268, 2
        %v349 = vrot.slane %v269, 2
        %v350 = vsel %vm332, %v348, %v349
        %v351 = vrot.slane %v270, 2
        %v352 = vsel %vm332, %v349, %v351
        %v361 = vadd.f32 %v324, %v335
        %v362 = vadd.f32 %v325, %v337
        %v363 = vadd.f32 %v326, %v340
        %v364 = vadd.f32 %v327, %v342
        %v365 = vadd.f32 %v328, %v345
        %v366 = vadd.f32 %v329, %v347
        %v367 = vadd.f32 %v330, %v350
        %v368 = vadd.f32 %v331, %v352
        %v381 = vrot.slane %v271, 1
        %v382 = vrot.slane %v272, 1
        %v383 = vsel %vm295, %v381, %v382
        %v384 = vrot.slane %v273, 1
        %v385 = vsel %vm295, %v382, %v384
        %v386 = vrot.slane %v274, 1
        %v387 = vrot.slane %v275, 1
        %v388 = vsel %vm295, %v386, %v387
        %v389 = vrot.slane %v276, 1
        %v390 = vsel %vm295, %v387, %v389
        %v391 = vrot.slane %v277, 1
        %v392 = vrot.slane %v278, 1
        %v393 = vsel %vm295, %v391, %v392
        %v394 = vrot.slane %v279, 1
        %v395 = vsel %vm295, %v392, %v394
        %v396 = vrot.slane %v280, 1
        %v397 = vrot.slane %v281, 1
        %v398 = vsel %vm295, %v396, %v397
        %v399 = vrot.slane %v282, 1
        %v400 = vsel %vm295, %v397, %v399
        %v409 = vadd.f32 %v271, %v383
        %v410 = vadd.f32 %v272, %v385
        %v411 = vadd.f32 %v274, %v388
        %v412 = vadd.f32 %v275, %v390
        %v413 = vadd.f32 %v277, %v393
        %v414 = vadd.f32 %v278, %v395
        %v415 = vadd.f32 %v280, %v398
        %v416 = vadd.f32 %v281, %v400
        %v417 = vrot.slane %v271, 2
        %v418 = vrot.slane %v272, 2
        %v419 = vsel %vm332, %v417, %v418
        %v420 = vrot.slane %v273, 2
        %v421 = vsel %vm332, %v418, %v420
        %v422 = vrot.slane %v274, 2
        %v423 = vrot.slane %v275, 2
        %v424 = vsel %vm332, %v422, %v423
        %v425 = vrot.slane %v276, 2
        %v426 = vsel %vm332, %v423, %v425
        %v427 = vrot.slane %v277, 2
        %v428 = vrot.slane %v278, 2
        %v429 = vsel %vm332, %v427, %v428
        %v430 = vrot.slane %v279, 2
        %v431 = vsel %vm332, %v428, %v430
        %v432 = vrot.slane %v280, 2
        %v433 = vrot.slane %v281, 2
        %v434 = vsel %vm332, %v432, %v433
        %v435 = vrot.slane %v282, 2
        %v436 = vsel %vm332, %v433, %v435
        %v445 = vadd.f32 %v409, %v419
        %v446 = vadd.f32 %v410, %v421
        %v447 = vadd.f32 %v411, %v424
        %v448 = vadd.f32 %v412, %v426
        %v449 = vadd.f32 %v413, %v429
        %v450 = vadd.f32 %v414, %v431
        %v451 = vadd.f32 %v415, %v434
        %v452 = vadd.f32 %v416, %v436
        %v453 = vmul.f32 %v259, %v259
        %v454 = vmul.f32 %v260, %v260
        %v455 = vmul.f32 %v261, %v261
        %v456 = vmul.f32 %v262, %v262
        %v457 = vmul.f32 %v263, %v263
        %v458 = vmul.f32 %v264, %v264
        %v459 = vmul.f32 %v265, %v265
        %v460 = vmul.f32 %v266, %v266
        %v461 = vmul.f32 %v267, %v267
        %v462 = vmul.f32 %v268, %v268
        %v463 = vmul.f32 %v269, %v269
        %v464 = vmul.f32 %v270, %v270
        %v477 = vrot.slane %v453, 1
        %v478 = vrot.slane %v454, 1
        %v479 = vsel %vm295, %v477, %v478
        %v480 = vrot.slane %v455, 1
        %v481 = vsel %vm295, %v478, %v480
        %v482 = vrot.slane %v456, 1
        %v483 = vrot.slane %v457, 1
        %v484 = vsel %vm295, %v482, %v483
        %v485 = vrot.slane %v458, 1
        %v486 = vsel %vm295, %v483, %v485
        %v487 = vrot.slane %v459, 1
        %v488 = vrot.slane %v460, 1
        %v489 = vsel %vm295, %v487, %v488
        %v490 = vrot.slane %v461, 1
        %v491 = vsel %vm295, %v488, %v490
        %v492 = vrot.slane %v462, 1
        %v493 = vrot.slane %v463, 1
        %v494 = vsel %vm295, %v492, %v493
        %v495 = vrot.slane %v464, 1
        %v496 = vsel %vm295, %v493, %v495
        %v505 = vadd.f32 %v453, %v479
        %v506 = vadd.f32 %v454, %v481
        %v507 = vadd.f32 %v456, %v484
        %v508 = vadd.f32 %v457, %v486
        %v509 = vadd.f32 %v459, %v489
        %v510 = vadd.f32 %v460, %v491
        %v511 = vadd.f32 %v462, %v494
        %v512 = vadd.f32 %v463, %v496
        %v513 = vrot.slane %v453, 2
        %v514 = vrot.slane %v454, 2
        %v515 = vsel %vm332, %v513, %v514
        %v516 = vrot.slane %v455, 2
        %v517 = vsel %vm332, %v514, %v516
        %v518 = vrot.slane %v456, 2
        %v519 = vrot.slane %v457, 2
        %v520 = vsel %vm332, %v518, %v519
        %v521 = vrot.slane %v458, 2
        %v522 = vsel %vm332, %v519, %v521
        %v523 = vrot.slane %v459, 2
        %v524 = vrot.slane %v460, 2
        %v525 = vsel %vm332, %v523, %v524
        %v526 = vrot.slane %v461, 2
        %v527 = vsel %vm332, %v524, %v526
        %v528 = vrot.slane %v462, 2
        %v529 = vrot.slane %v463, 2
        %v530 = vsel %vm332, %v528, %v529
        %v531 = vrot.slane %v464, 2
        %v532 = vsel %vm332, %v529, %v531
        %v541 = vadd.f32 %v505, %v515
        %v542 = vadd.f32 %v506, %v517
        %v543 = vadd.f32 %v507, %v520
        %v544 = vadd.f32 %v508, %v522
        %v545 = vadd.f32 %v509, %v525
        %v546 = vadd.f32 %v510, %v527
        %v547 = vadd.f32 %v511, %v530
        %v548 = vadd.f32 %v512, %v532
        %v549 = vmul.f32 %v271, %v271
        %v550 = vmul.f32 %v272, %v272
        %v551 = vmul.f32 %v273, %v273
        %v552 = vmul.f32 %v274, %v274
        %v553 = vmul.f32 %v275, %v275
        %v554 = vmul.f32 %v276, %v276
        %v555 = vmul.f32 %v277, %v277
        %v556 = vmul.f32 %v278, %v278
        %v557 = vmul.f32 %v279, %v279
        %v558 = vmul.f32 %v280, %v280
        %v559 = vmul.f32 %v281, %v281
        %v560 = vmul.f32 %v282, %v282
        %v573 = vrot.slane %v549, 1
        %v574 = vrot.slane %v550, 1
        %v575 = vsel %vm295, %v573, %v574
        %v576 = vrot.slane %v551, 1
        %v577 = vsel %vm295, %v574, %v576
        %v578 = vrot.slane %v552, 1
        %v579 = vrot.slane %v553, 1
        %v580 = vsel %vm295, %v578, %v579
        %v581 = vrot.slane %v554, 1
        %v582 = vsel %vm295, %v579, %v581
        %v583 = vrot.slane %v555, 1
        %v584 = vrot.slane %v556, 1
        %v585 = vsel %vm295, %v583, %v584
        %v586 = vrot.slane %v557, 1
        %v587 = vsel %vm295, %v584, %v586
        %v588 = vrot.slane %v558, 1
        %v589 = vrot.slane %v559, 1
        %v590 = vsel %vm295, %v588, %v589
        %v591 = vrot.slane %v560, 1
        %v592 = vsel %vm295, %v589, %v591
        %v601 = vadd.f32 %v549, %v575
        %v602 = vadd.f32 %v550, %v577
        %v603 = vadd.f32 %v552, %v580
        %v604 = vadd.f32 %v553, %v582
        %v605 = vadd.f32 %v555, %v585
        %v606 = vadd.f32 %v556, %v587
        %v607 = vadd.f32 %v558, %v590
        %v608 = vadd.f32 %v559, %v592
        %v609 = vrot.slane %v549, 2
        %v610 = vrot.slane %v550, 2
        %v611 = vsel %vm332, %v609, %v610
        %v612 = vrot.slane %v551, 2
        %v613 = vsel %vm332, %v610, %v612
        %v614 = vrot.slane %v552, 2
        %v615 = vrot.slane %v553, 2
        %v616 = vsel %vm332, %v614, %v615
        %v617 = vrot.slane %v554, 2
        %v618 = vsel %vm332, %v615, %v617
        %v619 = vrot.slane %v555, 2
        %v620 = vrot.slane %v556, 2
        %v621 = vsel %vm332, %v619, %v620
        %v622 = vrot.slane %v557, 2
        %v623 = vsel %vm332, %v620, %v622
        %v624 = vrot.slane %v558, 2
        %v625 = vrot.slane %v559, 2
        %v626 = vsel %vm332, %v624, %v625
        %v627 = vrot.slane %v560, 2
        %v628 = vsel %vm332, %v625, %v627
        %v637 = vadd.f32 %v601, %v611
        %v638 = vadd.f32 %v602, %v613
        %v639 = vadd.f32 %v603, %v616
        %v640 = vadd.f32 %v604, %v618
        %v641 = vadd.f32 %v605, %v621
        %v642 = vadd.f32 %v606, %v623
        %v643 = vadd.f32 %v607, %v626
        %v644 = vadd.f32 %v608, %v628
        %v645 = vmul.f32 %v259, %v271
        %v646 = vmul.f32 %v260, %v272
        %v647 = vmul.f32 %v261, %v273
        %v648 = vmul.f32 %v262, %v274
        %v649 = vmul.f32 %v263, %v275
        %v650 = vmul.f32 %v264, %v276
        %v651 = vmul.f32 %v265, %v277
        %v652 = vmul.f32 %v266, %v278
        %v653 = vmul.f32 %v267, %v279
        %v654 = vmul.f32 %v268, %v280
        %v655 = vmul.f32 %v269, %v281
        %v656 = vmul.f32 %v270, %v282
        %v669 = vrot.slane %v645, 1
        %v670 = vrot.slane %v646, 1
        %v671 = vsel %vm295, %v669, %v670
        %v672 = vrot.slane %v647, 1
        %v673 = vsel %vm295, %v670, %v672
        %v674 = vrot.slane %v648, 1
        %v675 = vrot.slane %v649, 1
        %v676 = vsel %vm295, %v674, %v675
        %v677 = vrot.slane %v650, 1
        %v678 = vsel %vm295, %v675, %v677
        %v679 = vrot.slane %v651, 1
        %v680 = vrot.slane %v652, 1
        %v681 = vsel %vm295, %v679, %v680
        %v682 = vrot.slane %v653, 1
        %v683 = vsel %vm295, %v680, %v682
        %v684 = vrot.slane %v654, 1
        %v685 = vrot.slane %v655, 1
        %v686 = vsel %vm295, %v684, %v685
        %v687 = vrot.slane %v656, 1
        %v688 = vsel %vm295, %v685, %v687
        %v697 = vadd.f32 %v645, %v671
        %v698 = vadd.f32 %v646, %v673
        %v699 = vadd.f32 %v648, %v676
        %v700 = vadd.f32 %v649, %v678
        %v701 = vadd.f32 %v651, %v681
        %v702 = vadd.f32 %v652, %v683
        %v703 = vadd.f32 %v654, %v686
        %v704 = vadd.f32 %v655, %v688
        %v705 = vrot.slane %v645, 2
        %v706 = vrot.slane %v646, 2
        %v707 = vsel %vm332, %v705, %v706
        %v708 = vrot.slane %v647, 2
        %v709 = vsel %vm332, %v706, %v708
        %v710 = vrot.slane %v648, 2
        %v711 = vrot.slane %v649, 2
        %v712 = vsel %vm332, %v710, %v711
        %v713 = vrot.slane %v650, 2
        %v714 = vsel %vm332, %v711, %v713
        %v715 = vrot.slane %v651, 2
        %v716 = vrot.slane %v652, 2
        %v717 = vsel %vm332, %v715, %v716
        %v718 = vrot.slane %v653, 2
        %v719 = vsel %vm332, %v716, %v718
        %v720 = vrot.slane %v654, 2
        %v721 = vrot.slane %v655, 2
        %v722 = vsel %vm332, %v720, %v721
        %v723 = vrot.slane %v656, 2
        %v724 = vsel %vm332, %v721, %v723
        %v733 = vadd.f32 %v697, %v707
        %v734 = vadd.f32 %v698, %v709
        %v735 = vadd.f32 %v699, %v712
        %v736 = vadd.f32 %v700, %v714
        %v737 = vadd.f32 %v701, %v717
        %v738 = vadd.f32 %v702, %v719
        %v739 = vadd.f32 %v703, %v722
        %v740 = vadd.f32 %v704, %v724
        %v741 = vlaneseq
        %v742 = vand.u32 %v741, 127
        %vm743 = vcmp.eq.s32.totalorder %v742, 0
        %vm744 = vcmp.eq.s32.totalorder %v742, 15
        %745 = vrot.lane.b32.xlu0 %v361, 1
        %v746 = vpop.permute.xlu0 %745
        %747 = vrot.lane.b32.xlu0 %v362, 1
        %v748 = vpop.permute.xlu0 %747
        %749 = vrot.lane.b32.xlu0 %v363, 1
        %v750 = vpop.permute.xlu0 %749
        %751 = vrot.lane.b32.xlu0 %v364, 1
        %v752 = vpop.permute.xlu0 %751
        %753 = vrot.lane.b32.xlu0 %v365, 1
        %v754 = vpop.permute.xlu0 %753
        %755 = vrot.lane.b32.xlu0 %v366, 1
        %v756 = vpop.permute.xlu0 %755
        %757 = vrot.lane.b32.xlu0 %v367, 1
        %v758 = vpop.permute.xlu0 %757
        %759 = vrot.lane.b32.xlu0 %v368, 1
        %v760 = vpop.permute.xlu0 %759
        %761 = vrot.lane.b32.xlu0 %v361, 127
        %v762 = vpop.permute.xlu0 %761
        %763 = vrot.lane.b32.xlu0 %v362, 127
        %v764 = vpop.permute.xlu0 %763
        %765 = vrot.lane.b32.xlu0 %v363, 127
        %v766 = vpop.permute.xlu0 %765
        %767 = vrot.lane.b32.xlu0 %v364, 127
        %v768 = vpop.permute.xlu0 %767
        %769 = vrot.lane.b32.xlu0 %v365, 127
        %v770 = vpop.permute.xlu0 %769
        %771 = vrot.lane.b32.xlu0 %v366, 127
        %v772 = vpop.permute.xlu0 %771
        %773 = vrot.lane.b32.xlu0 %v367, 127
        %v774 = vpop.permute.xlu0 %773
        %775 = vrot.lane.b32.xlu0 %v368, 127
        %v776 = vpop.permute.xlu0 %775
        %v777 = vadd.f32 %v361, %v746
        %v778 = vadd.f32 %v362, %v748
        %v779 = vadd.f32 %v363, %v750
        %v780 = vadd.f32 %v364, %v752
        %v781 = vadd.f32 %v365, %v754
        %v782 = vadd.f32 %v366, %v756
        %v783 = vadd.f32 %v367, %v758
        %v784 = vadd.f32 %v368, %v760
        %v785 = vadd.f32 %v777, %v762
        %v786 = vadd.f32 %v778, %v764
        %v787 = vadd.f32 %v779, %v766
        %v788 = vadd.f32 %v780, %v768
        %v789 = vadd.f32 %v781, %v770
        %v790 = vadd.f32 %v782, %v772
        %v791 = vadd.f32 %v783, %v774
        %v792 = vadd.f32 %v784, %v776
        %v793 = vmul.f32 %v361, 2.0
        %v794 = vmul.f32 %v362, 2.0
        %v795 = vmul.f32 %v363, 2.0
        %v796 = vmul.f32 %v364, 2.0
        %v797 = vmul.f32 %v365, 2.0
        %v798 = vmul.f32 %v366, 2.0
        %v799 = vmul.f32 %v367, 2.0
        %v800 = vmul.f32 %v368, 2.0
        %809 = vrot.lane.b32.xlu0 %v793, 127
        %v810 = vpop.permute.xlu0 %809
        %811 = vrot.lane.b32.xlu0 %v794, 127
        %v812 = vpop.permute.xlu0 %811
        %813 = vrot.lane.b32.xlu0 %v795, 127
        %v814 = vpop.permute.xlu0 %813
        %815 = vrot.lane.b32.xlu0 %v796, 127
        %v816 = vpop.permute.xlu0 %815
        %817 = vrot.lane.b32.xlu0 %v797, 127
        %v818 = vpop.permute.xlu0 %817
        %819 = vrot.lane.b32.xlu0 %v798, 127
        %v820 = vpop.permute.xlu0 %819
        %821 = vrot.lane.b32.xlu0 %v799, 127
        %v822 = vpop.permute.xlu0 %821
        %823 = vrot.lane.b32.xlu0 %v800, 127
        %v824 = vpop.permute.xlu0 %823
        %v833 = vadd.f32 %v361, %v810
        %v834 = vadd.f32 %v362, %v812
        %v835 = vadd.f32 %v363, %v814
        %v836 = vadd.f32 %v364, %v816
        %v837 = vadd.f32 %v365, %v818
        %v838 = vadd.f32 %v366, %v820
        %v839 = vadd.f32 %v367, %v822
        %v840 = vadd.f32 %v368, %v824
        %841 = vrot.lane.b32.xlu0 %v793, 1
        %v842 = vpop.permute.xlu0 %841
        %843 = vrot.lane.b32.xlu0 %v794, 1
        %v844 = vpop.permute.xlu0 %843
        %845 = vrot.lane.b32.xlu0 %v795, 1
        %v846 = vpop.permute.xlu0 %845
        %847 = vrot.lane.b32.xlu0 %v796, 1
        %v848 = vpop.permute.xlu0 %847
        %849 = vrot.lane.b32.xlu0 %v797, 1
        %v850 = vpop.permute.xlu0 %849
        %851 = vrot.lane.b32.xlu0 %v798, 1
        %v852 = vpop.permute.xlu0 %851
        %853 = vrot.lane.b32.xlu0 %v799, 1
        %v854 = vpop.permute.xlu0 %853
        %855 = vrot.lane.b32.xlu0 %v800, 1
        %v856 = vpop.permute.xlu0 %855
        %v865 = vadd.f32 %v361, %v842
        %v866 = vadd.f32 %v362, %v844
        %v867 = vadd.f32 %v363, %v846
        %v868 = vadd.f32 %v364, %v848
        %v869 = vadd.f32 %v365, %v850
        %v870 = vadd.f32 %v366, %v852
        %v871 = vadd.f32 %v367, %v854
        %v872 = vadd.f32 %v368, %v856
        %v873 = vsel %vm744, 1, 0
        %vm874 = vcmp.eq.s32.totalorder %v873, 1
        %876 = vset.pattern.permute.xlu0 15
        %877 = vperm.xlu0 %876, %v865
        %v878 = vpop.permute.xlu0 %877
        %881 = vset.pattern.permute.xlu0 15
        %882 = vperm.xlu0 %881, %v866
        %v883 = vpop.permute.xlu0 %882
        %886 = vset.pattern.permute.xlu0 15
        %887 = vperm.xlu0 %886, %v867
        %v888 = vpop.permute.xlu0 %887
        %891 = vset.pattern.permute.xlu0 15
        %892 = vperm.xlu0 %891, %v868
        %v893 = vpop.permute.xlu0 %892
        %896 = vset.pattern.permute.xlu0 15
        %897 = vperm.xlu0 %896, %v869
        %v898 = vpop.permute.xlu0 %897
        %901 = vset.pattern.permute.xlu0 15
        %902 = vperm.xlu0 %901, %v870
        %v903 = vpop.permute.xlu0 %902
        %906 = vset.pattern.permute.xlu0 15
        %907 = vperm.xlu0 %906, %v871
        %v908 = vpop.permute.xlu0 %907
        %911 = vset.pattern.permute.xlu0 15
        %912 = vperm.xlu0 %911, %v872
        %v913 = vpop.permute.xlu0 %912
        %v915 = vsel %vm874, %v878, %v785
        %v916 = vsel %vm874, %v883, %v786
        %v917 = vsel %vm874, %v888, %v787
        %v918 = vsel %vm874, %v893, %v788
        %v919 = vsel %vm874, %v898, %v789
        %v920 = vsel %vm874, %v903, %v790
        %v921 = vsel %vm874, %v908, %v791
        %v922 = vsel %vm874, %v913, %v792
        %v923 = vsel %vm743, 1, 0
        %vm924 = vcmp.eq.s32.totalorder %v923, 1
        %926 = vset.pattern.permute.xlu0 0
        %927 = vperm.xlu0 %926, %v833
        %v928 = vpop.permute.xlu0 %927
        %931 = vset.pattern.permute.xlu0 0
        %932 = vperm.xlu0 %931, %v834
        %v933 = vpop.permute.xlu0 %932
        %936 = vset.pattern.permute.xlu0 0
        %937 = vperm.xlu0 %936, %v835
        %v938 = vpop.permute.xlu0 %937
        %941 = vset.pattern.permute.xlu0 0
        %942 = vperm.xlu0 %941, %v836
        %v943 = vpop.permute.xlu0 %942
        %946 = vset.pattern.permute.xlu0 0
        %947 = vperm.xlu0 %946, %v837
        %v948 = vpop.permute.xlu0 %947
        %951 = vset.pattern.permute.xlu0 0
        %952 = vperm.xlu0 %951, %v838
        %v953 = vpop.permute.xlu0 %952
        %956 = vset.pattern.permute.xlu0 0
        %957 = vperm.xlu0 %956, %v839
        %v958 = vpop.permute.xlu0 %957
        %961 = vset.pattern.permute.xlu0 0
        %962 = vperm.xlu0 %961, %v840
        %v963 = vpop.permute.xlu0 %962
        %v965 = vsel %vm924, %v928, %v915
        %v966 = vsel %vm924, %v933, %v916
        %v967 = vsel %vm924, %v938, %v917
        %v968 = vsel %vm924, %v943, %v918
        %v969 = vsel %vm924, %v948, %v919
        %v970 = vsel %vm924, %v953, %v920
        %v971 = vsel %vm924, %v958, %v921
        %v972 = vsel %vm924, %v963, %v922
        %973 = vrot.lane.b32.xlu0 %v445, 1
        %v974 = vpop.permute.xlu0 %973
        %975 = vrot.lane.b32.xlu0 %v446, 1
        %v976 = vpop.permute.xlu0 %975
        %977 = vrot.lane.b32.xlu0 %v447, 1
        %v978 = vpop.permute.xlu0 %977
        %979 = vrot.lane.b32.xlu0 %v448, 1
        %v980 = vpop.permute.xlu0 %979
        %981 = vrot.lane.b32.xlu0 %v449, 1
        %v982 = vpop.permute.xlu0 %981
        %983 = vrot.lane.b32.xlu0 %v450, 1
        %v984 = vpop.permute.xlu0 %983
        %985 = vrot.lane.b32.xlu0 %v451, 1
        %v986 = vpop.permute.xlu0 %985
        %987 = vrot.lane.b32.xlu0 %v452, 1
        %v988 = vpop.permute.xlu0 %987
        %989 = vrot.lane.b32.xlu0 %v445, 127
        %v990 = vpop.permute.xlu0 %989
        %991 = vrot.lane.b32.xlu0 %v446, 127
        %v992 = vpop.permute.xlu0 %991
        %993 = vrot.lane.b32.xlu0 %v447, 127
        %v994 = vpop.permute.xlu0 %993
        %995 = vrot.lane.b32.xlu0 %v448, 127
        %v996 = vpop.permute.xlu0 %995
        %997 = vrot.lane.b32.xlu0 %v449, 127
        %v998 = vpop.permute.xlu0 %997
        %999 = vrot.lane.b32.xlu0 %v450, 127
        %v1000 = vpop.permute.xlu0 %999
        %1001 = vrot.lane.b32.xlu0 %v451, 127
        %v1002 = vpop.permute.xlu0 %1001
        %1003 = vrot.lane.b32.xlu0 %v452, 127
        %v1004 = vpop.permute.xlu0 %1003
        %v1005 = vadd.f32 %v445, %v974
        %v1006 = vadd.f32 %v446, %v976
        %v1007 = vadd.f32 %v447, %v978
        %v1008 = vadd.f32 %v448, %v980
        %v1009 = vadd.f32 %v449, %v982
        %v1010 = vadd.f32 %v450, %v984
        %v1011 = vadd.f32 %v451, %v986
        %v1012 = vadd.f32 %v452, %v988
        %v1013 = vadd.f32 %v1005, %v990
        %v1014 = vadd.f32 %v1006, %v992
        %v1015 = vadd.f32 %v1007, %v994
        %v1016 = vadd.f32 %v1008, %v996
        %v1017 = vadd.f32 %v1009, %v998
        %v1018 = vadd.f32 %v1010, %v1000
        %v1019 = vadd.f32 %v1011, %v1002
        %v1020 = vadd.f32 %v1012, %v1004
        %v1021 = vmul.f32 %v445, 2.0
        %v1022 = vmul.f32 %v446, 2.0
        %v1023 = vmul.f32 %v447, 2.0
        %v1024 = vmul.f32 %v448, 2.0
        %v1025 = vmul.f32 %v449, 2.0
        %v1026 = vmul.f32 %v450, 2.0
        %v1027 = vmul.f32 %v451, 2.0
        %v1028 = vmul.f32 %v452, 2.0
        %1037 = vrot.lane.b32.xlu0 %v1021, 127
        %v1038 = vpop.permute.xlu0 %1037
        %1039 = vrot.lane.b32.xlu0 %v1022, 127
        %v1040 = vpop.permute.xlu0 %1039
        %1041 = vrot.lane.b32.xlu0 %v1023, 127
        %v1042 = vpop.permute.xlu0 %1041
        %1043 = vrot.lane.b32.xlu0 %v1024, 127
        %v1044 = vpop.permute.xlu0 %1043
        %1045 = vrot.lane.b32.xlu0 %v1025, 127
        %v1046 = vpop.permute.xlu0 %1045
        %1047 = vrot.lane.b32.xlu0 %v1026, 127
        %v1048 = vpop.permute.xlu0 %1047
        %1049 = vrot.lane.b32.xlu0 %v1027, 127
        %v1050 = vpop.permute.xlu0 %1049
        %1051 = vrot.lane.b32.xlu0 %v1028, 127
        %v1052 = vpop.permute.xlu0 %1051
        %v1061 = vadd.f32 %v445, %v1038
        %v1062 = vadd.f32 %v446, %v1040
        %v1063 = vadd.f32 %v447, %v1042
        %v1064 = vadd.f32 %v448, %v1044
        %v1065 = vadd.f32 %v449, %v1046
        %v1066 = vadd.f32 %v450, %v1048
        %v1067 = vadd.f32 %v451, %v1050
        %v1068 = vadd.f32 %v452, %v1052
        %1069 = vrot.lane.b32.xlu0 %v1021, 1
        %v1070 = vpop.permute.xlu0 %1069
        %1071 = vrot.lane.b32.xlu0 %v1022, 1
        %v1072 = vpop.permute.xlu0 %1071
        %1073 = vrot.lane.b32.xlu0 %v1023, 1
        %v1074 = vpop.permute.xlu0 %1073
        %1075 = vrot.lane.b32.xlu0 %v1024, 1
        %v1076 = vpop.permute.xlu0 %1075
        %1077 = vrot.lane.b32.xlu0 %v1025, 1
        %v1078 = vpop.permute.xlu0 %1077
        %1079 = vrot.lane.b32.xlu0 %v1026, 1
        %v1080 = vpop.permute.xlu0 %1079
        %1081 = vrot.lane.b32.xlu0 %v1027, 1
        %v1082 = vpop.permute.xlu0 %1081
        %1083 = vrot.lane.b32.xlu0 %v1028, 1
        %v1084 = vpop.permute.xlu0 %1083
        %v1093 = vadd.f32 %v445, %v1070
        %v1094 = vadd.f32 %v446, %v1072
        %v1095 = vadd.f32 %v447, %v1074
        %v1096 = vadd.f32 %v448, %v1076
        %v1097 = vadd.f32 %v449, %v1078
        %v1098 = vadd.f32 %v450, %v1080
        %v1099 = vadd.f32 %v451, %v1082
        %v1100 = vadd.f32 %v452, %v1084
        %1102 = vset.pattern.permute.xlu0 15
        %1103 = vperm.xlu0 %1102, %v1093
        %v1104 = vpop.permute.xlu0 %1103
        %1107 = vset.pattern.permute.xlu0 15
        %1108 = vperm.xlu0 %1107, %v1094
        %v1109 = vpop.permute.xlu0 %1108
        %1112 = vset.pattern.permute.xlu0 15
        %1113 = vperm.xlu0 %1112, %v1095
        %v1114 = vpop.permute.xlu0 %1113
        %1117 = vset.pattern.permute.xlu0 15
        %1118 = vperm.xlu0 %1117, %v1096
        %v1119 = vpop.permute.xlu0 %1118
        %1122 = vset.pattern.permute.xlu0 15
        %1123 = vperm.xlu0 %1122, %v1097
        %v1124 = vpop.permute.xlu0 %1123
        %1127 = vset.pattern.permute.xlu0 15
        %1128 = vperm.xlu0 %1127, %v1098
        %v1129 = vpop.permute.xlu0 %1128
        %1132 = vset.pattern.permute.xlu0 15
        %1133 = vperm.xlu0 %1132, %v1099
        %v1134 = vpop.permute.xlu0 %1133
        %1137 = vset.pattern.permute.xlu0 15
        %1138 = vperm.xlu0 %1137, %v1100
        %v1139 = vpop.permute.xlu0 %1138
        %v1141 = vsel %vm874, %v1104, %v1013
        %v1142 = vsel %vm874, %v1109, %v1014
        %v1143 = vsel %vm874, %v1114, %v1015
        %v1144 = vsel %vm874, %v1119, %v1016
        %v1145 = vsel %vm874, %v1124, %v1017
        %v1146 = vsel %vm874, %v1129, %v1018
        %v1147 = vsel %vm874, %v1134, %v1019
        %v1148 = vsel %vm874, %v1139, %v1020
        %1150 = vset.pattern.permute.xlu0 0
        %1151 = vperm.xlu0 %1150, %v1061
        %v1152 = vpop.permute.xlu0 %1151
        %1155 = vset.pattern.permute.xlu0 0
        %1156 = vperm.xlu0 %1155, %v1062
        %v1157 = vpop.permute.xlu0 %1156
        %1160 = vset.pattern.permute.xlu0 0
        %1161 = vperm.xlu0 %1160, %v1063
        %v1162 = vpop.permute.xlu0 %1161
        %1165 = vset.pattern.permute.xlu0 0
        %1166 = vperm.xlu0 %1165, %v1064
        %v1167 = vpop.permute.xlu0 %1166
        %1170 = vset.pattern.permute.xlu0 0
        %1171 = vperm.xlu0 %1170, %v1065
        %v1172 = vpop.permute.xlu0 %1171
        %1175 = vset.pattern.permute.xlu0 0
        %1176 = vperm.xlu0 %1175, %v1066
        %v1177 = vpop.permute.xlu0 %1176
        %1180 = vset.pattern.permute.xlu0 0
        %1181 = vperm.xlu0 %1180, %v1067
        %v1182 = vpop.permute.xlu0 %1181
        %1185 = vset.pattern.permute.xlu0 0
        %1186 = vperm.xlu0 %1185, %v1068
        %v1187 = vpop.permute.xlu0 %1186
        %v1189 = vsel %vm924, %v1152, %v1141
        %v1190 = vsel %vm924, %v1157, %v1142
        %v1191 = vsel %vm924, %v1162, %v1143
        %v1192 = vsel %vm924, %v1167, %v1144
        %v1193 = vsel %vm924, %v1172, %v1145
        %v1194 = vsel %vm924, %v1177, %v1146
        %v1195 = vsel %vm924, %v1182, %v1147
        %v1196 = vsel %vm924, %v1187, %v1148
        %1197 = vrot.lane.b32.xlu0 %v541, 1
        %v1198 = vpop.permute.xlu0 %1197
        %1199 = vrot.lane.b32.xlu0 %v542, 1
        %v1200 = vpop.permute.xlu0 %1199
        %1201 = vrot.lane.b32.xlu0 %v543, 1
        %v1202 = vpop.permute.xlu0 %1201
        %1203 = vrot.lane.b32.xlu0 %v544, 1
        %v1204 = vpop.permute.xlu0 %1203
        %1205 = vrot.lane.b32.xlu0 %v545, 1
        %v1206 = vpop.permute.xlu0 %1205
        %1207 = vrot.lane.b32.xlu0 %v546, 1
        %v1208 = vpop.permute.xlu0 %1207
        %1209 = vrot.lane.b32.xlu0 %v547, 1
        %v1210 = vpop.permute.xlu0 %1209
        %1211 = vrot.lane.b32.xlu0 %v548, 1
        %v1212 = vpop.permute.xlu0 %1211
        %1213 = vrot.lane.b32.xlu0 %v541, 127
        %v1214 = vpop.permute.xlu0 %1213
        %1215 = vrot.lane.b32.xlu0 %v542, 127
        %v1216 = vpop.permute.xlu0 %1215
        %1217 = vrot.lane.b32.xlu0 %v543, 127
        %v1218 = vpop.permute.xlu0 %1217
        %1219 = vrot.lane.b32.xlu0 %v544, 127
        %v1220 = vpop.permute.xlu0 %1219
        %1221 = vrot.lane.b32.xlu0 %v545, 127
        %v1222 = vpop.permute.xlu0 %1221
        %1223 = vrot.lane.b32.xlu0 %v546, 127
        %v1224 = vpop.permute.xlu0 %1223
        %1225 = vrot.lane.b32.xlu0 %v547, 127
        %v1226 = vpop.permute.xlu0 %1225
        %1227 = vrot.lane.b32.xlu0 %v548, 127
        %v1228 = vpop.permute.xlu0 %1227
        %v1229 = vadd.f32 %v541, %v1198
        %v1230 = vadd.f32 %v542, %v1200
        %v1231 = vadd.f32 %v543, %v1202
        %v1232 = vadd.f32 %v544, %v1204
        %v1233 = vadd.f32 %v545, %v1206
        %v1234 = vadd.f32 %v546, %v1208
        %v1235 = vadd.f32 %v547, %v1210
        %v1236 = vadd.f32 %v548, %v1212
        %v1237 = vadd.f32 %v1229, %v1214
        %v1238 = vadd.f32 %v1230, %v1216
        %v1239 = vadd.f32 %v1231, %v1218
        %v1240 = vadd.f32 %v1232, %v1220
        %v1241 = vadd.f32 %v1233, %v1222
        %v1242 = vadd.f32 %v1234, %v1224
        %v1243 = vadd.f32 %v1235, %v1226
        %v1244 = vadd.f32 %v1236, %v1228
        %v1245 = vmul.f32 %v541, 2.0
        %v1246 = vmul.f32 %v542, 2.0
        %v1247 = vmul.f32 %v543, 2.0
        %v1248 = vmul.f32 %v544, 2.0
        %v1249 = vmul.f32 %v545, 2.0
        %v1250 = vmul.f32 %v546, 2.0
        %v1251 = vmul.f32 %v547, 2.0
        %v1252 = vmul.f32 %v548, 2.0
        %1261 = vrot.lane.b32.xlu0 %v1245, 127
        %v1262 = vpop.permute.xlu0 %1261
        %1263 = vrot.lane.b32.xlu0 %v1246, 127
        %v1264 = vpop.permute.xlu0 %1263
        %1265 = vrot.lane.b32.xlu0 %v1247, 127
        %v1266 = vpop.permute.xlu0 %1265
        %1267 = vrot.lane.b32.xlu0 %v1248, 127
        %v1268 = vpop.permute.xlu0 %1267
        %1269 = vrot.lane.b32.xlu0 %v1249, 127
        %v1270 = vpop.permute.xlu0 %1269
        %1271 = vrot.lane.b32.xlu0 %v1250, 127
        %v1272 = vpop.permute.xlu0 %1271
        %1273 = vrot.lane.b32.xlu0 %v1251, 127
        %v1274 = vpop.permute.xlu0 %1273
        %1275 = vrot.lane.b32.xlu0 %v1252, 127
        %v1276 = vpop.permute.xlu0 %1275
        %v1285 = vadd.f32 %v541, %v1262
        %v1286 = vadd.f32 %v542, %v1264
        %v1287 = vadd.f32 %v543, %v1266
        %v1288 = vadd.f32 %v544, %v1268
        %v1289 = vadd.f32 %v545, %v1270
        %v1290 = vadd.f32 %v546, %v1272
        %v1291 = vadd.f32 %v547, %v1274
        %v1292 = vadd.f32 %v548, %v1276
        %1293 = vrot.lane.b32.xlu0 %v1245, 1
        %v1294 = vpop.permute.xlu0 %1293
        %1295 = vrot.lane.b32.xlu0 %v1246, 1
        %v1296 = vpop.permute.xlu0 %1295
        %1297 = vrot.lane.b32.xlu0 %v1247, 1
        %v1298 = vpop.permute.xlu0 %1297
        %1299 = vrot.lane.b32.xlu0 %v1248, 1
        %v1300 = vpop.permute.xlu0 %1299
        %1301 = vrot.lane.b32.xlu0 %v1249, 1
        %v1302 = vpop.permute.xlu0 %1301
        %1303 = vrot.lane.b32.xlu0 %v1250, 1
        %v1304 = vpop.permute.xlu0 %1303
        %1305 = vrot.lane.b32.xlu0 %v1251, 1
        %v1306 = vpop.permute.xlu0 %1305
        %1307 = vrot.lane.b32.xlu0 %v1252, 1
        %v1308 = vpop.permute.xlu0 %1307
        %v1317 = vadd.f32 %v541, %v1294
        %v1318 = vadd.f32 %v542, %v1296
        %v1319 = vadd.f32 %v543, %v1298
        %v1320 = vadd.f32 %v544, %v1300
        %v1321 = vadd.f32 %v545, %v1302
        %v1322 = vadd.f32 %v546, %v1304
        %v1323 = vadd.f32 %v547, %v1306
        %v1324 = vadd.f32 %v548, %v1308
        %1326 = vset.pattern.permute.xlu0 15
        %1327 = vperm.xlu0 %1326, %v1317
        %v1328 = vpop.permute.xlu0 %1327
        %1331 = vset.pattern.permute.xlu0 15
        %1332 = vperm.xlu0 %1331, %v1318
        %v1333 = vpop.permute.xlu0 %1332
        %1336 = vset.pattern.permute.xlu0 15
        %1337 = vperm.xlu0 %1336, %v1319
        %v1338 = vpop.permute.xlu0 %1337
        %1341 = vset.pattern.permute.xlu0 15
        %1342 = vperm.xlu0 %1341, %v1320
        %v1343 = vpop.permute.xlu0 %1342
        %1346 = vset.pattern.permute.xlu0 15
        %1347 = vperm.xlu0 %1346, %v1321
        %v1348 = vpop.permute.xlu0 %1347
        %1351 = vset.pattern.permute.xlu0 15
        %1352 = vperm.xlu0 %1351, %v1322
        %v1353 = vpop.permute.xlu0 %1352
        %1356 = vset.pattern.permute.xlu0 15
        %1357 = vperm.xlu0 %1356, %v1323
        %v1358 = vpop.permute.xlu0 %1357
        %1361 = vset.pattern.permute.xlu0 15
        %1362 = vperm.xlu0 %1361, %v1324
        %v1363 = vpop.permute.xlu0 %1362
        %v1365 = vsel %vm874, %v1328, %v1237
        %v1366 = vsel %vm874, %v1333, %v1238
        %v1367 = vsel %vm874, %v1338, %v1239
        %v1368 = vsel %vm874, %v1343, %v1240
        %v1369 = vsel %vm874, %v1348, %v1241
        %v1370 = vsel %vm874, %v1353, %v1242
        %v1371 = vsel %vm874, %v1358, %v1243
        %v1372 = vsel %vm874, %v1363, %v1244
        %1374 = vset.pattern.permute.xlu0 0
        %1375 = vperm.xlu0 %1374, %v1285
        %v1376 = vpop.permute.xlu0 %1375
        %1379 = vset.pattern.permute.xlu0 0
        %1380 = vperm.xlu0 %1379, %v1286
        %v1381 = vpop.permute.xlu0 %1380
        %1384 = vset.pattern.permute.xlu0 0
        %1385 = vperm.xlu0 %1384, %v1287
        %v1386 = vpop.permute.xlu0 %1385
        %1389 = vset.pattern.permute.xlu0 0
        %1390 = vperm.xlu0 %1389, %v1288
        %v1391 = vpop.permute.xlu0 %1390
        %1394 = vset.pattern.permute.xlu0 0
        %1395 = vperm.xlu0 %1394, %v1289
        %v1396 = vpop.permute.xlu0 %1395
        %1399 = vset.pattern.permute.xlu0 0
        %1400 = vperm.xlu0 %1399, %v1290
        %v1401 = vpop.permute.xlu0 %1400
        %1404 = vset.pattern.permute.xlu0 0
        %1405 = vperm.xlu0 %1404, %v1291
        %v1406 = vpop.permute.xlu0 %1405
        %1409 = vset.pattern.permute.xlu0 0
        %1410 = vperm.xlu0 %1409, %v1292
        %v1411 = vpop.permute.xlu0 %1410
        %v1413 = vsel %vm924, %v1376, %v1365
        %v1414 = vsel %vm924, %v1381, %v1366
        %v1415 = vsel %vm924, %v1386, %v1367
        %v1416 = vsel %vm924, %v1391, %v1368
        %v1417 = vsel %vm924, %v1396, %v1369
        %v1418 = vsel %vm924, %v1401, %v1370
        %v1419 = vsel %vm924, %v1406, %v1371
        %v1420 = vsel %vm924, %v1411, %v1372
        %1421 = vrot.lane.b32.xlu0 %v637, 1
        %v1422 = vpop.permute.xlu0 %1421
        %1423 = vrot.lane.b32.xlu0 %v638, 1
        %v1424 = vpop.permute.xlu0 %1423
        %1425 = vrot.lane.b32.xlu0 %v639, 1
        %v1426 = vpop.permute.xlu0 %1425
        %1427 = vrot.lane.b32.xlu0 %v640, 1
        %v1428 = vpop.permute.xlu0 %1427
        %1429 = vrot.lane.b32.xlu0 %v641, 1
        %v1430 = vpop.permute.xlu0 %1429
        %1431 = vrot.lane.b32.xlu0 %v642, 1
        %v1432 = vpop.permute.xlu0 %1431
        %1433 = vrot.lane.b32.xlu0 %v643, 1
        %v1434 = vpop.permute.xlu0 %1433
        %1435 = vrot.lane.b32.xlu0 %v644, 1
        %v1436 = vpop.permute.xlu0 %1435
        %1437 = vrot.lane.b32.xlu0 %v637, 127
        %v1438 = vpop.permute.xlu0 %1437
        %1439 = vrot.lane.b32.xlu0 %v638, 127
        %v1440 = vpop.permute.xlu0 %1439
        %1441 = vrot.lane.b32.xlu0 %v639, 127
        %v1442 = vpop.permute.xlu0 %1441
        %1443 = vrot.lane.b32.xlu0 %v640, 127
        %v1444 = vpop.permute.xlu0 %1443
        %1445 = vrot.lane.b32.xlu0 %v641, 127
        %v1446 = vpop.permute.xlu0 %1445
        %1447 = vrot.lane.b32.xlu0 %v642, 127
        %v1448 = vpop.permute.xlu0 %1447
        %1449 = vrot.lane.b32.xlu0 %v643, 127
        %v1450 = vpop.permute.xlu0 %1449
        %1451 = vrot.lane.b32.xlu0 %v644, 127
        %v1452 = vpop.permute.xlu0 %1451
        %v1453 = vadd.f32 %v637, %v1422
        %v1454 = vadd.f32 %v638, %v1424
        %v1455 = vadd.f32 %v639, %v1426
        %v1456 = vadd.f32 %v640, %v1428
        %v1457 = vadd.f32 %v641, %v1430
        %v1458 = vadd.f32 %v642, %v1432
        %v1459 = vadd.f32 %v643, %v1434
        %v1460 = vadd.f32 %v644, %v1436
        %v1461 = vadd.f32 %v1453, %v1438
        %v1462 = vadd.f32 %v1454, %v1440
        %v1463 = vadd.f32 %v1455, %v1442
        %v1464 = vadd.f32 %v1456, %v1444
        %v1465 = vadd.f32 %v1457, %v1446
        %v1466 = vadd.f32 %v1458, %v1448
        %v1467 = vadd.f32 %v1459, %v1450
        %v1468 = vadd.f32 %v1460, %v1452
        %v1469 = vmul.f32 %v637, 2.0
        %v1470 = vmul.f32 %v638, 2.0
        %v1471 = vmul.f32 %v639, 2.0
        %v1472 = vmul.f32 %v640, 2.0
        %v1473 = vmul.f32 %v641, 2.0
        %v1474 = vmul.f32 %v642, 2.0
        %v1475 = vmul.f32 %v643, 2.0
        %v1476 = vmul.f32 %v644, 2.0
        %1485 = vrot.lane.b32.xlu0 %v1469, 127
        %v1486 = vpop.permute.xlu0 %1485
        %1487 = vrot.lane.b32.xlu0 %v1470, 127
        %v1488 = vpop.permute.xlu0 %1487
        %1489 = vrot.lane.b32.xlu0 %v1471, 127
        %v1490 = vpop.permute.xlu0 %1489
        %1491 = vrot.lane.b32.xlu0 %v1472, 127
        %v1492 = vpop.permute.xlu0 %1491
        %1493 = vrot.lane.b32.xlu0 %v1473, 127
        %v1494 = vpop.permute.xlu0 %1493
        %1495 = vrot.lane.b32.xlu0 %v1474, 127
        %v1496 = vpop.permute.xlu0 %1495
        %1497 = vrot.lane.b32.xlu0 %v1475, 127
        %v1498 = vpop.permute.xlu0 %1497
        %1499 = vrot.lane.b32.xlu0 %v1476, 127
        %v1500 = vpop.permute.xlu0 %1499
        %v1509 = vadd.f32 %v637, %v1486
        %v1510 = vadd.f32 %v638, %v1488
        %v1511 = vadd.f32 %v639, %v1490
        %v1512 = vadd.f32 %v640, %v1492
        %v1513 = vadd.f32 %v641, %v1494
        %v1514 = vadd.f32 %v642, %v1496
        %v1515 = vadd.f32 %v643, %v1498
        %v1516 = vadd.f32 %v644, %v1500
        %1517 = vrot.lane.b32.xlu0 %v1469, 1
        %v1518 = vpop.permute.xlu0 %1517
        %1519 = vrot.lane.b32.xlu0 %v1470, 1
        %v1520 = vpop.permute.xlu0 %1519
        %1521 = vrot.lane.b32.xlu0 %v1471, 1
        %v1522 = vpop.permute.xlu0 %1521
        %1523 = vrot.lane.b32.xlu0 %v1472, 1
        %v1524 = vpop.permute.xlu0 %1523
        %1525 = vrot.lane.b32.xlu0 %v1473, 1
        %v1526 = vpop.permute.xlu0 %1525
        %1527 = vrot.lane.b32.xlu0 %v1474, 1
        %v1528 = vpop.permute.xlu0 %1527
        %1529 = vrot.lane.b32.xlu0 %v1475, 1
        %v1530 = vpop.permute.xlu0 %1529
        %1531 = vrot.lane.b32.xlu0 %v1476, 1
        %v1532 = vpop.permute.xlu0 %1531
        %v1541 = vadd.f32 %v637, %v1518
        %v1542 = vadd.f32 %v638, %v1520
        %v1543 = vadd.f32 %v639, %v1522
        %v1544 = vadd.f32 %v640, %v1524
        %v1545 = vadd.f32 %v641, %v1526
        %v1546 = vadd.f32 %v642, %v1528
        %v1547 = vadd.f32 %v643, %v1530
        %v1548 = vadd.f32 %v644, %v1532
        %1550 = vset.pattern.permute.xlu0 15
        %1551 = vperm.xlu0 %1550, %v1541
        %v1552 = vpop.permute.xlu0 %1551
        %1555 = vset.pattern.permute.xlu0 15
        %1556 = vperm.xlu0 %1555, %v1542
        %v1557 = vpop.permute.xlu0 %1556
        %1560 = vset.pattern.permute.xlu0 15
        %1561 = vperm.xlu0 %1560, %v1543
        %v1562 = vpop.permute.xlu0 %1561
        %1565 = vset.pattern.permute.xlu0 15
        %1566 = vperm.xlu0 %1565, %v1544
        %v1567 = vpop.permute.xlu0 %1566
        %1570 = vset.pattern.permute.xlu0 15
        %1571 = vperm.xlu0 %1570, %v1545
        %v1572 = vpop.permute.xlu0 %1571
        %1575 = vset.pattern.permute.xlu0 15
        %1576 = vperm.xlu0 %1575, %v1546
        %v1577 = vpop.permute.xlu0 %1576
        %1580 = vset.pattern.permute.xlu0 15
        %1581 = vperm.xlu0 %1580, %v1547
        %v1582 = vpop.permute.xlu0 %1581
        %1585 = vset.pattern.permute.xlu0 15
        %1586 = vperm.xlu0 %1585, %v1548
        %v1587 = vpop.permute.xlu0 %1586
        %v1589 = vsel %vm874, %v1552, %v1461
        %v1590 = vsel %vm874, %v1557, %v1462
        %v1591 = vsel %vm874, %v1562, %v1463
        %v1592 = vsel %vm874, %v1567, %v1464
        %v1593 = vsel %vm874, %v1572, %v1465
        %v1594 = vsel %vm874, %v1577, %v1466
        %v1595 = vsel %vm874, %v1582, %v1467
        %v1596 = vsel %vm874, %v1587, %v1468
        %1598 = vset.pattern.permute.xlu0 0
        %1599 = vperm.xlu0 %1598, %v1509
        %v1600 = vpop.permute.xlu0 %1599
        %1603 = vset.pattern.permute.xlu0 0
        %1604 = vperm.xlu0 %1603, %v1510
        %v1605 = vpop.permute.xlu0 %1604
        %1608 = vset.pattern.permute.xlu0 0
        %1609 = vperm.xlu0 %1608, %v1511
        %v1610 = vpop.permute.xlu0 %1609
        %1613 = vset.pattern.permute.xlu0 0
        %1614 = vperm.xlu0 %1613, %v1512
        %v1615 = vpop.permute.xlu0 %1614
        %1618 = vset.pattern.permute.xlu0 0
        %1619 = vperm.xlu0 %1618, %v1513
        %v1620 = vpop.permute.xlu0 %1619
        %1623 = vset.pattern.permute.xlu0 0
        %1624 = vperm.xlu0 %1623, %v1514
        %v1625 = vpop.permute.xlu0 %1624
        %1628 = vset.pattern.permute.xlu0 0
        %1629 = vperm.xlu0 %1628, %v1515
        %v1630 = vpop.permute.xlu0 %1629
        %1633 = vset.pattern.permute.xlu0 0
        %1634 = vperm.xlu0 %1633, %v1516
        %v1635 = vpop.permute.xlu0 %1634
        %v1637 = vsel %vm924, %v1600, %v1589
        %v1638 = vsel %vm924, %v1605, %v1590
        %v1639 = vsel %vm924, %v1610, %v1591
        %v1640 = vsel %vm924, %v1615, %v1592
        %v1641 = vsel %vm924, %v1620, %v1593
        %v1642 = vsel %vm924, %v1625, %v1594
        %v1643 = vsel %vm924, %v1630, %v1595
        %v1644 = vsel %vm924, %v1635, %v1596
        %1645 = vrot.lane.b32.xlu0 %v733, 1
        %v1646 = vpop.permute.xlu0 %1645
        %1647 = vrot.lane.b32.xlu0 %v734, 1
        %v1648 = vpop.permute.xlu0 %1647
        %1649 = vrot.lane.b32.xlu0 %v735, 1
        %v1650 = vpop.permute.xlu0 %1649
        %1651 = vrot.lane.b32.xlu0 %v736, 1
        %v1652 = vpop.permute.xlu0 %1651
        %1653 = vrot.lane.b32.xlu0 %v737, 1
        %v1654 = vpop.permute.xlu0 %1653
        %1655 = vrot.lane.b32.xlu0 %v738, 1
        %v1656 = vpop.permute.xlu0 %1655
        %1657 = vrot.lane.b32.xlu0 %v739, 1
        %v1658 = vpop.permute.xlu0 %1657
        %1659 = vrot.lane.b32.xlu0 %v740, 1
        %v1660 = vpop.permute.xlu0 %1659
        %1661 = vrot.lane.b32.xlu0 %v733, 127
        %v1662 = vpop.permute.xlu0 %1661
        %1663 = vrot.lane.b32.xlu0 %v734, 127
        %v1664 = vpop.permute.xlu0 %1663
        %1665 = vrot.lane.b32.xlu0 %v735, 127
        %v1666 = vpop.permute.xlu0 %1665
        %1667 = vrot.lane.b32.xlu0 %v736, 127
        %v1668 = vpop.permute.xlu0 %1667
        %1669 = vrot.lane.b32.xlu0 %v737, 127
        %v1670 = vpop.permute.xlu0 %1669
        %1671 = vrot.lane.b32.xlu0 %v738, 127
        %v1672 = vpop.permute.xlu0 %1671
        %1673 = vrot.lane.b32.xlu0 %v739, 127
        %v1674 = vpop.permute.xlu0 %1673
        %1675 = vrot.lane.b32.xlu0 %v740, 127
        %v1676 = vpop.permute.xlu0 %1675
        %v1677 = vadd.f32 %v733, %v1646
        %v1678 = vadd.f32 %v734, %v1648
        %v1679 = vadd.f32 %v735, %v1650
        %v1680 = vadd.f32 %v736, %v1652
        %v1681 = vadd.f32 %v737, %v1654
        %v1682 = vadd.f32 %v738, %v1656
        %v1683 = vadd.f32 %v739, %v1658
        %v1684 = vadd.f32 %v740, %v1660
        %v1685 = vadd.f32 %v1677, %v1662
        %v1686 = vadd.f32 %v1678, %v1664
        %v1687 = vadd.f32 %v1679, %v1666
        %v1688 = vadd.f32 %v1680, %v1668
        %v1689 = vadd.f32 %v1681, %v1670
        %v1690 = vadd.f32 %v1682, %v1672
        %v1691 = vadd.f32 %v1683, %v1674
        %v1692 = vadd.f32 %v1684, %v1676
        %v1693 = vmul.f32 %v733, 2.0
        %v1694 = vmul.f32 %v734, 2.0
        %v1695 = vmul.f32 %v735, 2.0
        %v1696 = vmul.f32 %v736, 2.0
        %v1697 = vmul.f32 %v737, 2.0
        %v1698 = vmul.f32 %v738, 2.0
        %v1699 = vmul.f32 %v739, 2.0
        %v1700 = vmul.f32 %v740, 2.0
        %1709 = vrot.lane.b32.xlu0 %v1693, 127
        %v1710 = vpop.permute.xlu0 %1709
        %1711 = vrot.lane.b32.xlu0 %v1694, 127
        %v1712 = vpop.permute.xlu0 %1711
        %1713 = vrot.lane.b32.xlu0 %v1695, 127
        %v1714 = vpop.permute.xlu0 %1713
        %1715 = vrot.lane.b32.xlu0 %v1696, 127
        %v1716 = vpop.permute.xlu0 %1715
        %1717 = vrot.lane.b32.xlu0 %v1697, 127
        %v1718 = vpop.permute.xlu0 %1717
        %1719 = vrot.lane.b32.xlu0 %v1698, 127
        %v1720 = vpop.permute.xlu0 %1719
        %1721 = vrot.lane.b32.xlu0 %v1699, 127
        %v1722 = vpop.permute.xlu0 %1721
        %1723 = vrot.lane.b32.xlu0 %v1700, 127
        %v1724 = vpop.permute.xlu0 %1723
        %v1733 = vadd.f32 %v733, %v1710
        %v1734 = vadd.f32 %v734, %v1712
        %v1735 = vadd.f32 %v735, %v1714
        %v1736 = vadd.f32 %v736, %v1716
        %v1737 = vadd.f32 %v737, %v1718
        %v1738 = vadd.f32 %v738, %v1720
        %v1739 = vadd.f32 %v739, %v1722
        %v1740 = vadd.f32 %v740, %v1724
        %1741 = vrot.lane.b32.xlu0 %v1693, 1
        %v1742 = vpop.permute.xlu0 %1741
        %1743 = vrot.lane.b32.xlu0 %v1694, 1
        %v1744 = vpop.permute.xlu0 %1743
        %1745 = vrot.lane.b32.xlu0 %v1695, 1
        %v1746 = vpop.permute.xlu0 %1745
        %1747 = vrot.lane.b32.xlu0 %v1696, 1
        %v1748 = vpop.permute.xlu0 %1747
        %1749 = vrot.lane.b32.xlu0 %v1697, 1
        %v1750 = vpop.permute.xlu0 %1749
        %1751 = vrot.lane.b32.xlu0 %v1698, 1
        %v1752 = vpop.permute.xlu0 %1751
        %1753 = vrot.lane.b32.xlu0 %v1699, 1
        %v1754 = vpop.permute.xlu0 %1753
        %1755 = vrot.lane.b32.xlu0 %v1700, 1
        %v1756 = vpop.permute.xlu0 %1755
        %v1765 = vadd.f32 %v733, %v1742
        %v1766 = vadd.f32 %v734, %v1744
        %v1767 = vadd.f32 %v735, %v1746
        %v1768 = vadd.f32 %v736, %v1748
        %v1769 = vadd.f32 %v737, %v1750
        %v1770 = vadd.f32 %v738, %v1752
        %v1771 = vadd.f32 %v739, %v1754
        %v1772 = vadd.f32 %v740, %v1756
        %1774 = vset.pattern.permute.xlu0 15
        %1775 = vperm.xlu0 %1774, %v1765
        %v1776 = vpop.permute.xlu0 %1775
        %1779 = vset.pattern.permute.xlu0 15
        %1780 = vperm.xlu0 %1779, %v1766
        %v1781 = vpop.permute.xlu0 %1780
        %1784 = vset.pattern.permute.xlu0 15
        %1785 = vperm.xlu0 %1784, %v1767
        %v1786 = vpop.permute.xlu0 %1785
        %1789 = vset.pattern.permute.xlu0 15
        %1790 = vperm.xlu0 %1789, %v1768
        %v1791 = vpop.permute.xlu0 %1790
        %1794 = vset.pattern.permute.xlu0 15
        %1795 = vperm.xlu0 %1794, %v1769
        %v1796 = vpop.permute.xlu0 %1795
        %1799 = vset.pattern.permute.xlu0 15
        %1800 = vperm.xlu0 %1799, %v1770
        %v1801 = vpop.permute.xlu0 %1800
        %1804 = vset.pattern.permute.xlu0 15
        %1805 = vperm.xlu0 %1804, %v1771
        %v1806 = vpop.permute.xlu0 %1805
        %1809 = vset.pattern.permute.xlu0 15
        %1810 = vperm.xlu0 %1809, %v1772
        %v1811 = vpop.permute.xlu0 %1810
        %v1813 = vsel %vm874, %v1776, %v1685
        %v1814 = vsel %vm874, %v1781, %v1686
        %v1815 = vsel %vm874, %v1786, %v1687
        %v1816 = vsel %vm874, %v1791, %v1688
        %v1817 = vsel %vm874, %v1796, %v1689
        %v1818 = vsel %vm874, %v1801, %v1690
        %v1819 = vsel %vm874, %v1806, %v1691
        %v1820 = vsel %vm874, %v1811, %v1692
        %1822 = vset.pattern.permute.xlu0 0
        %1823 = vperm.xlu0 %1822, %v1733
        %v1824 = vpop.permute.xlu0 %1823
        %1827 = vset.pattern.permute.xlu0 0
        %1828 = vperm.xlu0 %1827, %v1734
        %v1829 = vpop.permute.xlu0 %1828
        %1832 = vset.pattern.permute.xlu0 0
        %1833 = vperm.xlu0 %1832, %v1735
        %v1834 = vpop.permute.xlu0 %1833
        %1837 = vset.pattern.permute.xlu0 0
        %1838 = vperm.xlu0 %1837, %v1736
        %v1839 = vpop.permute.xlu0 %1838
        %1842 = vset.pattern.permute.xlu0 0
        %1843 = vperm.xlu0 %1842, %v1737
        %v1844 = vpop.permute.xlu0 %1843
        %1847 = vset.pattern.permute.xlu0 0
        %1848 = vperm.xlu0 %1847, %v1738
        %v1849 = vpop.permute.xlu0 %1848
        %1852 = vset.pattern.permute.xlu0 0
        %1853 = vperm.xlu0 %1852, %v1739
        %v1854 = vpop.permute.xlu0 %1853
        %1857 = vset.pattern.permute.xlu0 0
        %1858 = vperm.xlu0 %1857, %v1740
        %v1859 = vpop.permute.xlu0 %1858
        %v1861 = vsel %vm924, %v1824, %v1813
        %v1862 = vsel %vm924, %v1829, %v1814
        %v1863 = vsel %vm924, %v1834, %v1815
        %v1864 = vsel %vm924, %v1839, %v1816
        %v1865 = vsel %vm924, %v1844, %v1817
        %v1866 = vsel %vm924, %v1849, %v1818
        %v1867 = vsel %vm924, %v1854, %v1819
        %v1868 = vsel %vm924, %v1859, %v1820
        %v1869 = vmul.f32 %v965, %v1189
        %v1870 = vmul.f32 %v966, %v1190
        %v1871 = vmul.f32 %v967, %v1191
        %v1872 = vmul.f32 %v968, %v1192
        %v1873 = vmul.f32 %v969, %v1193
        %v1874 = vmul.f32 %v970, %v1194
        %v1875 = vmul.f32 %v971, %v1195
        %v1876 = vmul.f32 %v972, %v1196
        %v1877 = vmul.f32 %v965, %v965
        %v1878 = vmul.f32 %v966, %v966
        %v1879 = vmul.f32 %v967, %v967
        %v1880 = vmul.f32 %v968, %v968
        %v1881 = vmul.f32 %v969, %v969
        %v1882 = vmul.f32 %v970, %v970
        %v1883 = vmul.f32 %v971, %v971
        %v1884 = vmul.f32 %v972, %v972
        %v1885 = vmul.f32 %v1189, %v1189
        %v1886 = vmul.f32 %v1190, %v1190
        %v1887 = vmul.f32 %v1191, %v1191
        %v1888 = vmul.f32 %v1192, %v1192
        %v1889 = vmul.f32 %v1193, %v1193
        %v1890 = vmul.f32 %v1194, %v1194
        %v1891 = vmul.f32 %v1195, %v1195
        %v1892 = vmul.f32 %v1196, %v1196
        %v1893 = vmul.f32 %v1869, 2.0
        %v1894 = vmul.f32 %v1870, 2.0
        %v1895 = vmul.f32 %v1871, 2.0
        %v1896 = vmul.f32 %v1872, 2.0
        %v1897 = vmul.f32 %v1873, 2.0
        %v1898 = vmul.f32 %v1874, 2.0
        %v1899 = vmul.f32 %v1875, 2.0
        %v1900 = vmul.f32 %v1876, 2.0
        %v1901 = vadd.f32 %v1893, 0.0081
        %v1902 = vadd.f32 %v1894, 0.0081
        %v1903 = vadd.f32 %v1895, 0.0081
        %v1904 = vadd.f32 %v1896, 0.0081
        %v1905 = vadd.f32 %v1897, 0.0081
        %v1906 = vadd.f32 %v1898, 0.0081
        %v1907 = vadd.f32 %v1899, 0.0081
        %v1908 = vadd.f32 %v1900, 0.0081
        %v1909 = vmul.f32 %v1861, 9.0
        %v1910 = vmul.f32 %v1862, 9.0
        %v1911 = vmul.f32 %v1863, 9.0
        %v1912 = vmul.f32 %v1864, 9.0
        %v1913 = vmul.f32 %v1865, 9.0
        %v1914 = vmul.f32 %v1866, 9.0
        %v1915 = vmul.f32 %v1867, 9.0
        %v1916 = vmul.f32 %v1868, 9.0
        %v1917 = vsub.f32 %v1909, %v1869
        %v1918 = vsub.f32 %v1910, %v1870
        %v1919 = vsub.f32 %v1911, %v1871
        %v1920 = vsub.f32 %v1912, %v1872
        %v1921 = vsub.f32 %v1913, %v1873
        %v1922 = vsub.f32 %v1914, %v1874
        %v1923 = vsub.f32 %v1915, %v1875
        %v1924 = vsub.f32 %v1916, %v1876
        %v1925 = vmul.f32 %v1917, 2.0
        %v1926 = vmul.f32 %v1918, 2.0
        %v1927 = vmul.f32 %v1919, 2.0
        %v1928 = vmul.f32 %v1920, 2.0
        %v1929 = vmul.f32 %v1921, 2.0
        %v1930 = vmul.f32 %v1922, 2.0
        %v1931 = vmul.f32 %v1923, 2.0
        %v1932 = vmul.f32 %v1924, 2.0
        %v1933 = vadd.f32 %v1925, 0.0729
        %v1934 = vadd.f32 %v1926, 0.0729
        %v1935 = vadd.f32 %v1927, 0.0729
        %v1936 = vadd.f32 %v1928, 0.0729
        %v1937 = vadd.f32 %v1929, 0.0729
        %v1938 = vadd.f32 %v1930, 0.0729
        %v1939 = vadd.f32 %v1931, 0.0729
        %v1940 = vadd.f32 %v1932, 0.0729
        %v1941 = vmul.f32 %v1901, %v1933
        %v1942 = vmul.f32 %v1902, %v1934
        %v1943 = vmul.f32 %v1903, %v1935
        %v1944 = vmul.f32 %v1904, %v1936
        %v1945 = vmul.f32 %v1905, %v1937
        %v1946 = vmul.f32 %v1906, %v1938
        %v1947 = vmul.f32 %v1907, %v1939
        %v1948 = vmul.f32 %v1908, %v1940
        %v1949 = vadd.f32 %v1877, %v1885
        %v1950 = vadd.f32 %v1878, %v1886
        %v1951 = vadd.f32 %v1879, %v1887
        %v1952 = vadd.f32 %v1880, %v1888
        %v1953 = vadd.f32 %v1881, %v1889
        %v1954 = vadd.f32 %v1882, %v1890
        %v1955 = vadd.f32 %v1883, %v1891
        %v1956 = vadd.f32 %v1884, %v1892
        %v1957 = vadd.f32 %v1949, 0.0081
        %v1958 = vadd.f32 %v1950, 0.0081
        %v1959 = vadd.f32 %v1951, 0.0081
        %v1960 = vadd.f32 %v1952, 0.0081
        %v1961 = vadd.f32 %v1953, 0.0081
        %v1962 = vadd.f32 %v1954, 0.0081
        %v1963 = vadd.f32 %v1955, 0.0081
        %v1964 = vadd.f32 %v1956, 0.0081
        %v1965 = vadd.f32 %v1413, %v1637
        %v1966 = vadd.f32 %v1414, %v1638
        %v1967 = vadd.f32 %v1415, %v1639
        %v1968 = vadd.f32 %v1416, %v1640
        %v1969 = vadd.f32 %v1417, %v1641
        %v1970 = vadd.f32 %v1418, %v1642
        %v1971 = vadd.f32 %v1419, %v1643
        %v1972 = vadd.f32 %v1420, %v1644
        %v1973 = vmul.f32 %v1965, 9.0
        %v1974 = vmul.f32 %v1966, 9.0
        %v1975 = vmul.f32 %v1967, 9.0
        %v1976 = vmul.f32 %v1968, 9.0
        %v1977 = vmul.f32 %v1969, 9.0
        %v1978 = vmul.f32 %v1970, 9.0
        %v1979 = vmul.f32 %v1971, 9.0
        %v1980 = vmul.f32 %v1972, 9.0
        %v1981 = vsub.f32 %v1973, %v1877
        %v1982 = vsub.f32 %v1974, %v1878
        %v1983 = vsub.f32 %v1975, %v1879
        %v1984 = vsub.f32 %v1976, %v1880
        %v1985 = vsub.f32 %v1977, %v1881
        %v1986 = vsub.f32 %v1978, %v1882
        %v1987 = vsub.f32 %v1979, %v1883
        %v1988 = vsub.f32 %v1980, %v1884
        %v1989 = vsub.f32 %v1981, %v1885
        %v1990 = vsub.f32 %v1982, %v1886
        %v1991 = vsub.f32 %v1983, %v1887
        %v1992 = vsub.f32 %v1984, %v1888
        %v1993 = vsub.f32 %v1985, %v1889
        %v1994 = vsub.f32 %v1986, %v1890
        %v1995 = vsub.f32 %v1987, %v1891
        %v1996 = vsub.f32 %v1988, %v1892
        %v1997 = vadd.f32 %v1989, 0.0729
        %v1998 = vadd.f32 %v1990, 0.0729
        %v1999 = vadd.f32 %v1991, 0.0729
        %v2000 = vadd.f32 %v1992, 0.0729
        %v2001 = vadd.f32 %v1993, 0.0729
        %v2002 = vadd.f32 %v1994, 0.0729
        %v2003 = vadd.f32 %v1995, 0.0729
        %v2004 = vadd.f32 %v1996, 0.0729
        %v2005 = vmul.f32 %v1957, %v1997
        %v2006 = vmul.f32 %v1958, %v1998
        %v2007 = vmul.f32 %v1959, %v1999
        %v2008 = vmul.f32 %v1960, %v2000
        %v2009 = vmul.f32 %v1961, %v2001
        %v2010 = vmul.f32 %v1962, %v2002
        %v2011 = vmul.f32 %v1963, %v2003
        %v2012 = vmul.f32 %v1964, %v2004
        %v2013 = vrcp.pop %v2005
        %v2014 = vmul.f32 %v2005, %v2013
        %v2015 = vsub.f32 1.0, %v2014
        %v2016 = vmul.f32 %v2013, %v2015
        %v2017 = vadd.f32 %v2013, %v2016
        %vm2018 = vweird.f32 %v2005
        %vm2019 = vweird.f32 %v2013
        %vm2020 = vmor %vm2018, %vm2019
        %v2021 = vsel %vm2020, %v2013, %v2017
        %v2022 = vand.u32 2147483647, %v2005
        %vm2023 = vcmp.eq.f32.partialorder %v2022, 8.507059e+37
        %v2024 = vand.u32 %v2005, 2147483648
        %v2025 = vor.u32 1.1754944e-38, %v2024
        %v2026 = vsel %vm2023, %v2025, %v2021
        %v2027 = vrcp.pop %v2006
        %v2028 = vmul.f32 %v2006, %v2027
        %v2029 = vsub.f32 1.0, %v2028
        %v2030 = vmul.f32 %v2027, %v2029
        %v2031 = vadd.f32 %v2027, %v2030
        %vm2032 = vweird.f32 %v2006
        %vm2033 = vweird.f32 %v2027
        %vm2034 = vmor %vm2032, %vm2033
        %v2035 = vsel %vm2034, %v2027, %v2031
        %v2036 = vand.u32 2147483647, %v2006
        %vm2037 = vcmp.eq.f32.partialorder %v2036, 8.507059e+37
        %v2038 = vand.u32 %v2006, 2147483648
        %v2039 = vor.u32 1.1754944e-38, %v2038
        %v2040 = vsel %vm2037, %v2039, %v2035
        %v2041 = vrcp.pop %v2007
        %v2042 = vmul.f32 %v2007, %v2041
        %v2043 = vsub.f32 1.0, %v2042
        %v2044 = vmul.f32 %v2041, %v2043
        %v2045 = vadd.f32 %v2041, %v2044
        %vm2046 = vweird.f32 %v2007
        %vm2047 = vweird.f32 %v2041
        %vm2048 = vmor %vm2046, %vm2047
        %v2049 = vsel %vm2048, %v2041, %v2045
        %v2050 = vand.u32 2147483647, %v2007
        %vm2051 = vcmp.eq.f32.partialorder %v2050, 8.507059e+37
        %v2052 = vand.u32 %v2007, 2147483648
        %v2053 = vor.u32 1.1754944e-38, %v2052
        %v2054 = vsel %vm2051, %v2053, %v2049
        %v2055 = vrcp.pop %v2008
        %v2056 = vmul.f32 %v2008, %v2055
        %v2057 = vsub.f32 1.0, %v2056
        %v2058 = vmul.f32 %v2055, %v2057
        %v2059 = vadd.f32 %v2055, %v2058
        %vm2060 = vweird.f32 %v2008
        %vm2061 = vweird.f32 %v2055
        %vm2062 = vmor %vm2060, %vm2061
        %v2063 = vsel %vm2062, %v2055, %v2059
        %v2064 = vand.u32 2147483647, %v2008
        %vm2065 = vcmp.eq.f32.partialorder %v2064, 8.507059e+37
        %v2066 = vand.u32 %v2008, 2147483648
        %v2067 = vor.u32 1.1754944e-38, %v2066
        %v2068 = vsel %vm2065, %v2067, %v2063
        %v2069 = vrcp.pop %v2009
        %v2070 = vmul.f32 %v2009, %v2069
        %v2071 = vsub.f32 1.0, %v2070
        %v2072 = vmul.f32 %v2069, %v2071
        %v2073 = vadd.f32 %v2069, %v2072
        %vm2074 = vweird.f32 %v2009
        %vm2075 = vweird.f32 %v2069
        %vm2076 = vmor %vm2074, %vm2075
        %v2077 = vsel %vm2076, %v2069, %v2073
        %v2078 = vand.u32 2147483647, %v2009
        %vm2079 = vcmp.eq.f32.partialorder %v2078, 8.507059e+37
        %v2080 = vand.u32 %v2009, 2147483648
        %v2081 = vor.u32 1.1754944e-38, %v2080
        %v2082 = vsel %vm2079, %v2081, %v2077
        %v2083 = vrcp.pop %v2010
        %v2084 = vmul.f32 %v2010, %v2083
        %v2085 = vsub.f32 1.0, %v2084
        %v2086 = vmul.f32 %v2083, %v2085
        %v2087 = vadd.f32 %v2083, %v2086
        %vm2088 = vweird.f32 %v2010
        %vm2089 = vweird.f32 %v2083
        %vm2090 = vmor %vm2088, %vm2089
        %v2091 = vsel %vm2090, %v2083, %v2087
        %v2092 = vand.u32 2147483647, %v2010
        %vm2093 = vcmp.eq.f32.partialorder %v2092, 8.507059e+37
        %v2094 = vand.u32 %v2010, 2147483648
        %v2095 = vor.u32 1.1754944e-38, %v2094
        %v2096 = vsel %vm2093, %v2095, %v2091
        %v2097 = vrcp.pop %v2011
        %v2098 = vmul.f32 %v2011, %v2097
        %v2099 = vsub.f32 1.0, %v2098
        %v2100 = vmul.f32 %v2097, %v2099
        %v2101 = vadd.f32 %v2097, %v2100
        %vm2102 = vweird.f32 %v2011
        %vm2103 = vweird.f32 %v2097
        %vm2104 = vmor %vm2102, %vm2103
        %v2105 = vsel %vm2104, %v2097, %v2101
        %v2106 = vand.u32 2147483647, %v2011
        %vm2107 = vcmp.eq.f32.partialorder %v2106, 8.507059e+37
        %v2108 = vand.u32 %v2011, 2147483648
        %v2109 = vor.u32 1.1754944e-38, %v2108
        %v2110 = vsel %vm2107, %v2109, %v2105
        %v2111 = vrcp.pop %v2012
        %v2112 = vmul.f32 %v2012, %v2111
        %v2113 = vsub.f32 1.0, %v2112
        %v2114 = vmul.f32 %v2111, %v2113
        %v2115 = vadd.f32 %v2111, %v2114
        %vm2116 = vweird.f32 %v2012
        %vm2117 = vweird.f32 %v2111
        %vm2118 = vmor %vm2116, %vm2117
        %v2119 = vsel %vm2118, %v2111, %v2115
        %v2120 = vand.u32 2147483647, %v2012
        %vm2121 = vcmp.eq.f32.partialorder %v2120, 8.507059e+37
        %v2122 = vand.u32 %v2012, 2147483648
        %v2123 = vor.u32 1.1754944e-38, %v2122
        %v2124 = vsel %vm2121, %v2123, %v2119
        %v2125 = vmul.f32 %v1941, %v2026
        %v2126 = vmul.f32 %v1942, %v2040
        %v2127 = vmul.f32 %v1943, %v2054
        %v2128 = vmul.f32 %v1944, %v2068
        %v2129 = vmul.f32 %v1945, %v2082
        %v2130 = vmul.f32 %v1946, %v2096
        %v2131 = vmul.f32 %v1947, %v2110
        %v2132 = vmul.f32 %v1948, %v2124
        %v2133 = vsub.f32 1.0, %v2125
        %v2134 = vsub.f32 1.0, %v2126
        %v2135 = vsub.f32 1.0, %v2127
        %v2136 = vsub.f32 1.0, %v2128
        %v2137 = vsub.f32 1.0, %v2129
        %v2138 = vsub.f32 1.0, %v2130
        %v2139 = vsub.f32 1.0, %v2131
        %v2140 = vsub.f32 1.0, %v2132
        %v2141 = vmul.f32 %v2133, 0.5
        %v2142 = vmul.f32 %v2134, 0.5
        %v2143 = vmul.f32 %v2135, 0.5
        %v2144 = vmul.f32 %v2136, 0.5
        %v2145 = vmul.f32 %v2137, 0.5
        %v2146 = vmul.f32 %v2138, 0.5
        %v2147 = vmul.f32 %v2139, 0.5
        %v2148 = vmul.f32 %v2140, 0.5
        %v2149 = vmax.f32 %v2141, 0.0
        %v2150 = vmax.f32 %v2142, 0.0
        %v2151 = vmax.f32 %v2143, 0.0
        %v2152 = vmax.f32 %v2144, 0.0
        %v2153 = vmax.f32 %v2145, 0.0
        %v2154 = vmax.f32 %v2146, 0.0
        %v2155 = vmax.f32 %v2147, 0.0
        %v2156 = vmax.f32 %v2148, 0.0
        %v2157 = vmin.f32 %v2149, 1.0
        %v2158 = vmin.f32 %v2150, 1.0
        %v2159 = vmin.f32 %v2151, 1.0
        %v2160 = vmin.f32 %v2152, 1.0
        %v2161 = vmin.f32 %v2153, 1.0
        %v2162 = vmin.f32 %v2154, 1.0
        %v2163 = vmin.f32 %v2155, 1.0
        %v2164 = vmin.f32 %v2156, 1.0
        %2165 = vst [vmem:[%s207] sm:$0xff] %v2157
        %2166 = vst [vmem:[%s207 + $0x8] sm:$0xff] %v2158
        %2167 = vst [vmem:[%s207 + $0x10] sm:$0xff] %v2159
        %2168 = vst [vmem:[%s207 + $0x18] sm:$0xff] %v2160
        %2169 = vst [vmem:[%s207 + $0x20] sm:$0xff] %v2161
        %2170 = vst [vmem:[%s207 + $0x28] sm:$0xff] %v2162
        %2171 = vst [vmem:[%s207 + $0x30] sm:$0xff] %v2163
        %2172 = vst [vmem:[%s207 + $0x38] sm:$0xff] %v2164
        %s2173 = sand.u32 %s82, 1
        %s2174 = scalar_lea.sflag [#allocation6], %s2173
        %s2175 = sand.u32 %s82, 1
        %s2176 = smul.addr %s2175, 64
        %s2177 = scalar_lea.vmem [#allocation9], %s2176
        // Predicated region
        $region37: #{tpu_custom_call.1} parent=27 // pred_check
          %p2178 = pneg %p92
        $region38: #{tpu_custom_call.1} parent=27 // pred_check_branch
          %2180 = sbr.rel (%p2178) target = $region40
        $region39: #{tpu_custom_call.1} parent=27 // pred_region
          %s2181 = smul.u32 4, %s22
          %2183 = vsyncadd %s2174, 0
          %s2184 = smul.addr %s2181, 2
          %s2185 = smul.addr %s2184, 8
          %s2186 = scalar_lea.hbm %s2, %s2185
          %s2187 = sshll.u32 %s2177, 4
          %s2188 = int_to_ptr.vmem [resolvable:$true] %s2187
          %s2189 = sshll.u32 %s2186, 4
          %s2190 = int_to_ptr.hbm [resolvable:$true] %s2189
          %2195 = dma.vmem_to_hbm [thread:$0]  %s2188, 1024, %s2190, %s2174, 128, 128, 8
        $region40: #{tpu_custom_call.1} parent=27 // pred_fallthru
          _
      $region28: #{tpu_custom_call.1} parent=5 // pred_fallthru
        _
      %p2196 = scmp.le.s32.totalorder 2, %s17
      // Predicated region
      $region41: #{tpu_custom_call.1} parent=5 // pred_check
        %p2197 = pneg %p2196
      $region42: #{tpu_custom_call.1} parent=5 // pred_check_branch
        %2199 = sbr.rel (%p2197) target = $region44
      $region43: #{tpu_custom_call.1} parent=5 // pred_region
        %s2200 = ssub.s32 %s17, 2
        // Predicated region
        $region45: #{tpu_custom_call.1} parent=43 // pred_check
          %p2201 = pneg %p98
        $region46: #{tpu_custom_call.1} parent=43 // pred_check_branch
          %2203 = sbr.rel (%p2201) target = $region48
        $region47: #{tpu_custom_call.1} parent=43 // pred_region
          %s2204 = sand.u32 %s83, 1
          %s2205 = scalar_lea.sflag [#allocation6], %s2204
          %s2206 = sand.u32 %s83, 1
          %s2207 = smul.addr %s2206, 64
          %s2208 = scalar_lea.vmem [#allocation9], %s2207
          %2210 = dma.done %s2205, 1024
        $region48: #{tpu_custom_call.1} parent=43 // pred_fallthru
          _
      $region44: #{tpu_custom_call.1} parent=5 // pred_fallthru
        _
    $region6: #{tpu_custom_call.1} parent=1 // loop_footer
      %s21 = sadd.s32 1, %s17
    $region7: #{tpu_custom_call.1} parent=1 // loop_footer_branch
      %16 = sbr.rel target = $region3
    $region8: #{tpu_custom_call.1} parent=1 // loop_exit
      _
    %2211 = vsyncpa [#allocation5], 1
    %s2212 = scalar_lea.sflag [#allocation5], 1
    %2213 = vsyncpa %s2212, 1
    %2214 = vsyncpa [#allocation8], 1
    %s2215 = scalar_lea.sflag [#allocation8], 1
    %2216 = vsyncpa %s2215, 1
    %2217 = vsyncpa [#allocation6], 1
    %s2218 = scalar_lea.sflag [#allocation6], 1
    %2219 = vsyncpa %s2218, 1

</llo_original>
